<compile_context>
chip_gen: v7x
topology: tpu7x:2x2x1
jax: 0.10.0
libtpu: 0.0.40
codegen_flags: <defaults>
</compile_context>

<pallas_src>
import functools

import jax
import jax.numpy as jnp
from jax import lax
from jax.experimental import pallas as pl
from jax.experimental.pallas import tpu as pltpu

EPS = 1e-8   # matches nn.GroupNorm(..., eps=1e-08) in the PyTorch model


# --------------------------------------------------------------------------
# Fused whole-network Pallas kernel
# --------------------------------------------------------------------------

def _tcn_e_kernel(
    # --- SMEM ---
    scal_ref,                                   # (2*NB+1,) PReLU slopes [p1..., p2..., out]
    # --- VMEM ---
    x_ref,                                      # (C, B*L) folded input
    gvec_ref,                                   # (GR, 4)  [ln_g, ln_b, bn_b, out_b]
    bn_w_ref, out_w_ref,                        # (BN, C), (Od, BN)
    c1w_ref,                                    # (NB, H, BN)
    rsw_ref,                                    # (NB, 2*BN, H) fused res+skip weights
    bvec_ref,                                   # (NB, VR, 16) per-block small vectors
    wcat_ref,                                   # (NB, 3*B*L, L) stacked kron(w2[:,k], I_L)
    bmat_ref,                                   # (NB, L, B*L)   kron(inv_w, I_L)
    # --- output ---
    o_ref,                                      # (Od, B*L)
    *, dilations, L, C, BN, H, M, Od):
    f32 = jnp.float32
    NB = len(dilations)
    BL = x_ref.shape[1]
    B = M                                       # batch == num_mic (asserted in wrapper)

    def dot(a, b):
        return jnp.dot(a, b, preferred_element_type=f32)

    def prelu(x, a):
        return jnp.where(x >= 0, x, a * x)

    # ---- segment geometry built in-kernel from iota (no structural operands) ----
    lane_i = lax.broadcasted_iota(jnp.int32, (B, BL), 1)
    row_i = lax.broadcasted_iota(jnp.int32, (B, BL), 0)
    lo = row_i * L
    seg_masks = jnp.logical_and(lane_i >= lo, lane_i < lo + L).astype(f32)   # (B, BL)
    lane_f = lax.broadcasted_iota(jnp.int32, (1, BL), 1).astype(f32)         # (1, BL)
    seg_id = jnp.sum(row_i.astype(f32) * seg_masks, axis=0, keepdims=True)   # (1, BL)
    pos = lane_f - float(L) * seg_id               # within-segment time position
    row_h = lax.broadcasted_iota(jnp.int32, (H, BL), 0)
    mask_top = (row_h >= 1).astype(f32)            # zero row 0 after sublane roll(+1)
    mask_bot = (row_h <= H - 2).astype(f32)        # zero row H-1 after sublane roll(-1)

    def seg_reduce(rowvec):                        # (1, BL) -> (B, 1) per-segment sums
        return jnp.sum(seg_masks * rowvec, axis=1, keepdims=True)

    def seg_bcast(col):                            # (B, 1) -> (1, BL)
        return jnp.sum(col * seg_masks, axis=0, keepdims=True)

    def group_norm(x, gamma, beta):
        # GroupNorm(num_groups=1) per batch segment of the folded lane axis.
        # Centered variance E[(x - mu)^2] in f32, segment-parallel reductions.
        inv_n = 1.0 / float(x.shape[0] * L)
        mean_lane = seg_bcast(seg_reduce(jnp.sum(x, axis=0, keepdims=True)) * inv_n)
        xc = x - mean_lane
        var_col = seg_reduce(jnp.sum(xc * xc, axis=0, keepdims=True)) * inv_n
        scale_lane = seg_bcast(lax.rsqrt(var_col + EPS))
        return xc * (scale_lane * gamma) + beta

    lane_mask_cache = {}

    def lane_masks(d):
        # Validity masks for the +/-d lane rolls (zero lanes that would wrap across
        # a batch-segment boundary -- the role the same_seg matrices used to play).
        if d not in lane_mask_cache:
            lane_mask_cache[d] = ((pos >= float(d)).astype(f32),
                                  (pos <= float(L - 1 - d)).astype(f32))
        return lane_mask_cache[d]

    gv = gvec_ref[...]

    # ---- LN (GroupNorm) + bottleneck 1x1 conv ----
    h0 = group_norm(x_ref[...], gv[:C, 0:1], gv[:C, 1:2])
    out = dot(bn_w_ref[...], h0) + gv[:BN, 2:3]                 # (BN, BL)
    skip_sum = jnp.zeros_like(out)

    # ---- DepthConv2d_E blocks (unrolled; all weights stay in VMEM) ----
    for i, d in enumerate(dilations):
        bv = bvec_ref[i]                                        # (VR, 16)

        # 1x1 conv -> PReLU -> GroupNorm
        z = dot(c1w_ref[i], out) + bv[:H, 3:4]                  # (H, BL)
        z = group_norm(prelu(z, scal_ref[i]), bv[:H, 4:5], bv[:H, 5:6])

        # dilated depthwise conv (kernel=3, padding=dilation): XLU lane rolls + masks.
        ml, mr = lane_masks(d)
        z = (bv[:H, 0:1] * (ml * pltpu.roll(z, d, axis=1))          # x[:, l - d]
             + bv[:H, 1:2] * z                                      # x[:, l]
             + bv[:H, 2:3] * (mr * pltpu.roll(z, BL - d, axis=1))   # x[:, l + d]
             + bv[:H, 6:7])

        # mic mixer: Conv2d(M->1,(3,1),pad(1,0)) + Conv2d(1->M,1x1), rank-1 factored:
        #   sublane rolls (+row masks) give the h+/-1 taps, one K=3*BL matmul does the
        #   w2-weighted mic reduction, one K=L matmul broadcasts back with inv_w.
        z_up = mask_top * pltpu.roll(z, 1, axis=0)              # row h -> z[h-1]
        z_dn = mask_bot * pltpu.roll(z, H - 1, axis=0)          # row h -> z[h+1]
        zcat = jnp.concatenate([z_up, z, z_dn], axis=1)         # (H, 3*BL)
        y = dot(zcat, wcat_ref[i])                              # (H, L)
        mixc_lane = seg_bcast(bv[:M, 10:11])                    # inv_w*b2 + inv_b per mic
        z = dot(y, bmat_ref[i]) + mixc_lane                     # (H, BL)

        # PReLU -> GroupNorm
        z = group_norm(prelu(z, scal_ref[NB + i]), bv[:H, 7:8], bv[:H, 8:9])

        # residual + skip 1x1 convs fused into one matmul, then split rows
        rs = dot(rsw_ref[i], z) + bv[:2 * BN, 9:10]             # (2*BN, BL)
        out = out + rs[:BN, :]
        skip_sum = skip_sum + rs[BN:, :]

    # ---- output layer: PReLU -> 1x1 conv (single lane-dense store) ----
    o_ref[...] = dot(out_w_ref[...], prelu(skip_sum, scal_ref[2 * NB])) + gv[:Od, 3:4]


# --------------------------------------------------------------------------
# Wrapper: weight folding / packing + single pallas_call
# --------------------------------------------------------------------------

def build_tcn_e(params):
    """Returns a jitted x -> y callable running the full TCN_E forward as ONE Pallas kernel."""
    blocks = params['blocks']
    dilations = tuple(int(blk['dilation']) for blk in blocks)
    NB = len(blocks)

    Cin = params['bn_w'].shape[1]
    BN = params['bn_w'].shape[0]
    Od = params['out_w'].shape[0]
    Hd = blocks[0]['conv1_w'].shape[0]
    M = blocks[0]['conv2d_w'].shape[1]                 # num_mic
    assert blocks[0]['dconv_w'].shape[1] == 3, "fused depthwise conv assumes kernel=3"

    @jax.jit
    def forward(x):
        B, C, L = x.shape
        assert B == M, "TCN_E's mic-mixing Conv2d requires batch == num_mic"
        assert C == Cin
        BL = B * L
        f32 = jnp.float32

        # ---- fold batch into the lane axis: (B, C, L) -> (C, B*L) ----
        xf = jnp.transpose(x, (1, 0, 2)).reshape(C, BL).astype(f32)

        # ---- global small-vector slab: [ln_g, ln_b, bn_b, out_b] ----
        GR = max(Cin, BN, Od)
        gvec = jnp.zeros((GR, 4), f32)
        gvec = gvec.at[:Cin, 0].set(params['ln_g'].astype(f32))
        gvec = gvec.at[:Cin, 1].set(params['ln_b'].astype(f32))
        gvec = gvec.at[:BN, 2].set(params['bn_b'].astype(f32))
        gvec = gvec.at[:Od, 3].set(params['out_b'].astype(f32))

        # ---- per-block matrix stacks (kernel indexes them with static ints) ----
        c1w_s = jnp.stack([blk['conv1_w'] for blk in blocks]).astype(f32)        # (NB, H, BN)
        rsw_s = jnp.stack([jnp.concatenate([blk['res_w'], blk['skip_w']], axis=0)
                           for blk in blocks]).astype(f32)                        # (NB, 2*BN, H)

        # ---- per-block small-vector slab (one operand instead of ~12) ----
        # cols: 0-2 dconv taps | 3 c1b | 4 g1 | 5 b1 | 6 db | 7 g2 | 8 b2 | 9 rsb | 10 mix const
        VR = max(Hd, 2 * BN, M)

        def pack_bvec(blk):
            v = jnp.zeros((VR, 16), f32)
            v = v.at[:Hd, 0:3].set(blk['dconv_w'].astype(f32))
            v = v.at[:Hd, 3].set(blk['conv1_b'].astype(f32))
            v = v.at[:Hd, 4].set(blk['reg1_g'].astype(f32))
            v = v.at[:Hd, 5].set(blk['reg1_b'].astype(f32))
            v = v.at[:Hd, 6].set(blk['dconv_b'].astype(f32))
            v = v.at[:Hd, 7].set(blk['reg2_g'].astype(f32))
            v = v.at[:Hd, 8].set(blk['reg2_b'].astype(f32))
            v = v.at[:2 * BN, 9].set(
                jnp.concatenate([blk['res_b'], blk['skip_b']]).astype(f32))
            cmix = (blk['inv_w'].reshape(M) * blk['conv2d_b'].reshape(())
                    + blk['inv_b'].reshape(M)).astype(f32)
            v = v.at[:M, 10].set(cmix)
            return v

        bvec = jnp.stack([pack_bvec(blk) for blk in blocks])                     # (NB, VR, 16)

        # ---- rank-1 factored mic-mixer structural matrices ----
        #   Wcat = concat_k kron(w2[:,k], I_L)  : (3*B*L, L)
        #   Bmat = kron(inv_w, I_L)             : (L, B*L)
        eyeL = jnp.eye(L, dtype=f32)
        wcat_list, bmat_list = [], []
        for blk in blocks:
            w2m = blk['conv2d_w'].reshape(M, 3).astype(f32)
            ivw = blk['inv_w'].reshape(M).astype(f32)
            wcat_list.append(jnp.concatenate(
                [jnp.kron(w2m[:, k:k + 1], eyeL) for k in range(3)], axis=0))
            bmat_list.append(jnp.kron(ivw.reshape(1, M), eyeL))
        wcat_s = jnp.stack(wcat_list)                                            # (NB, 3*BL, L)
        bmat_s = jnp.stack(bmat_list)                                            # (NB, L, BL)

        # ---- all PReLU slopes in one SMEM array ----
        scal = jnp.concatenate([
            jnp.stack([blk['prelu1'].reshape(()) for blk in blocks]),
            jnp.stack([blk['prelu2'].reshape(()) for blk in blocks]),
            params['out_prelu'].reshape(1)]).astype(f32)                          # (2*NB+1,)

        kern = functools.partial(_tcn_e_kernel, dilations=dilations, L=L,
                                 C=Cin, BN=BN, H=Hd, M=M, Od=Od)
        smem = pl.BlockSpec(memory_space=pltpu.MemorySpace.SMEM)
        vmem = pl.BlockSpec(memory_space=pltpu.MemorySpace.VMEM)

        # TODO(synk): for production-size L / block counts, tile the time axis with a
        # halo grid marked "parallel" (v7x dual-TC) and index per-block weights by a
        # grid axis instead of the full unroll; unnecessary at these demo shapes.
        out = pl.pallas_call(
            kern,
            out_shape=jax.ShapeDtypeStruct((Od, BL), f32),
            in_specs=[smem] + [vmem] * 9,
            out_specs=vmem,
            compiler_params=pltpu.CompilerParams(vmem_limit_bytes=32 * 1024 * 1024),
        )(scal, xf, gvec,
          params['bn_w'].astype(f32), params['out_w'].astype(f32),
          c1w_s, rsw_s, bvec, wcat_s, bmat_s)

        # ---- unfold lanes back to (B, output_dim, L) ----
        return out.reshape(Od, B, L).transpose(1, 0, 2)

    return forward


# --------------------------------------------------------------------------
# Pure-JAX reference (mirrors the PyTorch forward) for correctness checking
# --------------------------------------------------------------------------

def _groupnorm_ref(x, gamma, beta):
    mean = jnp.mean(x, axis=(1, 2), keepdims=True)
    var = jnp.mean((x - mean) ** 2, axis=(1, 2), keepdims=True)   # centered, like PyTorch
    return (x - mean) * lax.rsqrt(var + EPS) * gamma.reshape(1, -1, 1) + beta.reshape(1, -1, 1)


def _prelu_ref(x, a):
    return jnp.where(x >= 0, x, a * x)


def _conv1x1_ref(x, w, b):
    return jnp.einsum('oc,bcl->bol', w, x) + b.reshape(1, -1, 1)


def _depthwise_ref(x, w, b, d):
    B, C, L = x.shape
    xp = jnp.pad(x, ((0, 0), (0, 0), (d, d)))
    return (w[:, 0].reshape(1, -1, 1) * xp[:, :, 0:L]
            + w[:, 1].reshape(1, -1, 1) * xp[:, :, d:d + L]
            + w[:, 2].reshape(1, -1, 1) * xp[:, :, 2 * d:2 * d + L]
            + b.reshape(1, -1, 1))


def _micmix_ref(x, w2, b2, inv_w, inv_b):
    # x: (M, H, L), interpreted as the unbatched Conv2d input exactly like PyTorch does.
    M, H, L = x.shape
    w2m = w2.reshape(M, 3)
    ivw = inv_w.reshape(M)
    ivb = inv_b.reshape(M)
    xp = jnp.pad(x, ((0, 0), (1, 1), (0, 0)))
    y = (jnp.einsum('m,mhl->hl', w2m[:, 0], xp[:, 0:H, :])
         + jnp.einsum('m,mhl->hl', w2m[:, 1], xp[:, 1:H + 1, :])
         + jnp.einsum('m,mhl->hl', w2m[:, 2], xp[:, 2:H + 2, :])
         + b2.reshape(()))
    return ivw.reshape(M, 1, 1) * y[None] + ivb.reshape(M, 1, 1)


def tcn_e_reference(params, x):
    h = _groupnorm_ref(x, params['ln_g'], params['ln_b'])
    out = _conv1x1_ref(h, params['bn_w'], params['bn_b'])
    skip_sum = jnp.zeros_like(out)
    for blk in params['blocks']:
        z = _conv1x1_ref(out, blk['conv1_w'], blk['conv1_b'])
        z = _groupnorm_ref(_prelu_ref(z, blk['prelu1']), blk['reg1_g'], blk['reg1_b'])
        z = _depthwise_ref(z, blk['dconv_w'], blk['dconv_b'], blk['dilation'])
        z = _micmix_ref(z, blk['conv2d_w'], blk['conv2d_b'], blk['inv_w'], blk['inv_b'])
        z = _groupnorm_ref(_prelu_ref(z, blk['prelu2']), blk['reg2_g'], blk['reg2_b'])
        out = out + _conv1x1_ref(z, blk['res_w'], blk['res_b'])
        skip_sum = skip_sum + _conv1x1_ref(z, blk['skip_w'], blk['skip_b'])
    return _conv1x1_ref(_prelu_ref(skip_sum, params['out_prelu']),
                        params['out_w'], params['out_b'])


# --------------------------------------------------------------------------
# Deterministic parameter initialization (synthetic weights, PyTorch shapes)
# --------------------------------------------------------------------------

def init_params(key, input_dim, output_dim, BN_dim, hidden_dim, layer, stack,
                kernel=3, num_mic=4):
    keys = iter(jax.random.split(key, 256))

    def w(shape, scale=0.1):
        return scale * jax.random.normal(next(keys), shape, jnp.float32)

    params = {
        'ln_g': jnp.ones((input_dim,), jnp.float32),
        'ln_b': jnp.zeros((input_dim,), jnp.float32),
        'bn_w': w((BN_dim, input_dim)),
        'bn_b': w((BN_dim,)),
        'out_prelu': jnp.array(0.25, jnp.float32),
        'out_w': w((output_dim, BN_dim)),
        'out_b': w((output_dim,)),
    }
    blocks = []
    for _s in range(stack):
        for i in range(layer):
            blocks.append(dict(
                dilation=2 ** i,
                conv1_w=w((hidden_dim, BN_dim)),
                conv1_b=w((hidden_dim,)),
                prelu1=jnp.array(0.25, jnp.float32),
                reg1_g=jnp.ones((hidden_dim,), jnp.float32),
                reg1_b=jnp.zeros((hidden_dim,), jnp.float32),
                dconv_w=w((hidden_dim, kernel)),          # torch (H, 1, K) -> (H, K)
                dconv_b=w((hidden_dim,)),
                conv2d_w=w((1, num_mic, 3, 1)),
                conv2d_b=w((1,)),
                inv_w=w((num_mic, 1, 1, 1)),
                inv_b=w((num_mic,)),
                prelu2=jnp.array(0.25, jnp.float32),
                reg2_g=jnp.ones((hidden_dim,), jnp.float32),
                reg2_b=jnp.zeros((hidden_dim,), jnp.float32),
                res_w=w((BN_dim, hidden_dim)),
                res_b=w((BN_dim,)),
                skip_w=w((BN_dim, hidden_dim)),
                skip_b=w((BN_dim,)),
            ))
    params['blocks'] = blocks
    return params


# --------------------------------------------------------------------------

if __name__ == "__main__":
    num_mic = 4                      # batch must equal num_mic (see semantics note)
    input_dim, output_dim = 8, 8
    BN_dim, hidden_dim = 8, 16
    layer, stack, kernel = 2, 1, 3
    L = 32                           # B * L = 128 -> fully lane-dense folded layout

    key = jax.random.PRNGKey(0)
    pkey, xkey = jax.random.split(key)
    params = init_params(pkey, input_dim, output_dim, BN_dim, hidden_dim,
                         layer, stack, kernel, num_mic)
    x = jax.random.normal(xkey, (num_mic, input_dim, L), jnp.float32)

    fwd = build_tcn_e(params)
    y = jax.block_until_ready(fwd(x))
    assert y.shape == (num_mic, output_dim, L), y.shape
    assert bool(jnp.all(jnp.isfinite(y)))

    # Correctness check vs. a plain-JAX transcription of the PyTorch forward.
    y_ref = jax.block_until_ready(tcn_e_reference(params, x))
    err = float(jnp.max(jnp.abs(y - y_ref)))
    scale = float(jnp.max(jnp.abs(y_ref)))
    assert err <= 1e-4 * max(scale, 1.0), f"max abs error vs reference: {err} (scale {scale})"

    print("KERNEL_OK")
</pallas_src>

<mosaic_0001>
module attributes {stable_mosaic.version = 11 : i64} {
  func.func @_tcn_e_kernel(%arg0: memref<5xf32, #tpu.memory_space<smem>>, %arg1: memref<8x128xf32, #tpu.memory_space<vmem>>, %arg2: memref<8x4xf32, #tpu.memory_space<vmem>>, %arg3: memref<8x8xf32, #tpu.memory_space<vmem>>, %arg4: memref<8x8xf32, #tpu.memory_space<vmem>>, %arg5: memref<2x16x8xf32, #tpu.memory_space<vmem>>, %arg6: memref<2x16x16xf32, #tpu.memory_space<vmem>>, %arg7: memref<2x16x16xf32, #tpu.memory_space<vmem>>, %arg8: memref<2x384x32xf32, #tpu.memory_space<vmem>>, %arg9: memref<2x32x128xf32, #tpu.memory_space<vmem>>, %arg10: memref<8x128xf32, #tpu.memory_space<vmem>>) attributes {dimension_semantics = [], scalar_prefetch = 0 : i64, scratch_operands = 0 : i64, tpu.core_type = #tpu.core_type<tc>} {
    %0 = tpu.iota {dimensions = array<i32: 1>} : vector<4x128xi32>
    %1 = tpu.iota {dimensions = array<i32: 0>} : vector<4x128xi32>
    %c32_i32 = arith.constant 32 : i32
    %2 = vector.broadcast %c32_i32 : i32 to vector<4x128xi32>
    %3 = arith.muli %1, %2 : vector<4x128xi32>
    %4 = arith.cmpi sge, %0, %3 : vector<4x128xi32>
    %c32_i32_0 = arith.constant 32 : i32
    %5 = vector.broadcast %c32_i32_0 : i32 to vector<4x128xi32>
    %6 = arith.addi %3, %5 : vector<4x128xi32>
    %7 = arith.cmpi slt, %0, %6 : vector<4x128xi32>
    %8 = arith.andi %4, %7 : vector<4x128xi1>
    %9 = arith.extui %8 : vector<4x128xi1> to vector<4x128xi32>
    %10 = arith.sitofp %9 : vector<4x128xi32> to vector<4x128xf32>
    %11 = tpu.iota {dimensions = array<i32: 1>} : vector<1x128xi32>
    %12 = arith.sitofp %11 : vector<1x128xi32> to vector<1x128xf32>
    %13 = arith.sitofp %1 : vector<4x128xi32> to vector<4x128xf32>
    %14 = arith.mulf %13, %10 : vector<4x128xf32>
    %cst = arith.constant dense<0.000000e+00> : vector<128xf32>
    %15 = vector.multi_reduction <add>, %14, %cst [0] : vector<4x128xf32> to vector<128xf32>
    %16 = vector.shape_cast %15 : vector<128xf32> to vector<1x128xf32>
    %cst_1 = arith.constant 3.200000e+01 : f32
    %17 = vector.broadcast %cst_1 : f32 to vector<1x128xf32>
    %18 = arith.mulf %17, %16 : vector<1x128xf32>
    %19 = arith.subf %12, %18 : vector<1x128xf32>
    %20 = tpu.iota {dimensions = array<i32: 0>} : vector<16x128xi32>
    %c1_i32 = arith.constant 1 : i32
    %21 = vector.broadcast %c1_i32 : i32 to vector<16x128xi32>
    %22 = arith.cmpi sge, %20, %21 : vector<16x128xi32>
    %23 = arith.extui %22 : vector<16x128xi1> to vector<16x128xi32>
    %24 = arith.sitofp %23 : vector<16x128xi32> to vector<16x128xf32>
    %c14_i32 = arith.constant 14 : i32
    %25 = vector.broadcast %c14_i32 : i32 to vector<16x128xi32>
    %26 = arith.cmpi sle, %20, %25 : vector<16x128xi32>
    %27 = arith.extui %26 : vector<16x128xi1> to vector<16x128xi32>
    %28 = arith.sitofp %27 : vector<16x128xi32> to vector<16x128xf32>
    %c0 = arith.constant 0 : index
    %c0_2 = arith.constant 0 : index
    %29 = vector.load %arg2[%c0, %c0_2] : memref<8x4xf32, #tpu.memory_space<vmem>>, vector<8x4xf32>
    %c0_3 = arith.constant 0 : index
    %c0_4 = arith.constant 0 : index
    %30 = vector.load %arg1[%c0_3, %c0_4] : memref<8x128xf32, #tpu.memory_space<vmem>>, vector<8x128xf32>
    %31 = vector.extract_strided_slice %29 {offsets = [0, 0], sizes = [8, 1], strides = [1, 1]} : vector<8x4xf32> to vector<8x1xf32>
    %32 = vector.extract_strided_slice %29 {offsets = [0, 1], sizes = [8, 1], strides = [1, 1]} : vector<8x4xf32> to vector<8x1xf32>
    %cst_5 = arith.constant dense<0.000000e+00> : vector<128xf32>
    %33 = vector.multi_reduction <add>, %30, %cst_5 [0] : vector<8x128xf32> to vector<128xf32>
    %34 = vector.shape_cast %33 : vector<128xf32> to vector<1x128xf32>
    %35 = vector.broadcast %34 : vector<1x128xf32> to vector<4x128xf32>
    %36 = arith.mulf %10, %35 : vector<4x128xf32>
    %cst_6 = arith.constant dense<0.000000e+00> : vector<4xf32>
    %37 = vector.multi_reduction <add>, %36, %cst_6 [1] : vector<4x128xf32> to vector<4xf32>
    %38 = vector.shape_cast %37 : vector<4xf32> to vector<4x1xf32>
    %cst_7 = arith.constant 3.906250e-03 : f32
    %39 = vector.broadcast %cst_7 : f32 to vector<4x1xf32>
    %40 = arith.mulf %38, %39 : vector<4x1xf32>
    %41 = vector.broadcast %40 : vector<4x1xf32> to vector<4x128xf32>
    %42 = arith.mulf %41, %10 : vector<4x128xf32>
    %cst_8 = arith.constant dense<0.000000e+00> : vector<128xf32>
    %43 = vector.multi_reduction <add>, %42, %cst_8 [0] : vector<4x128xf32> to vector<128xf32>
    %44 = vector.shape_cast %43 : vector<128xf32> to vector<1x128xf32>
    %45 = vector.broadcast %44 : vector<1x128xf32> to vector<8x128xf32>
    %46 = arith.subf %30, %45 : vector<8x128xf32>
    %47 = arith.mulf %46, %46 : vector<8x128xf32>
    %cst_9 = arith.constant dense<0.000000e+00> : vector<128xf32>
    %48 = vector.multi_reduction <add>, %47, %cst_9 [0] : vector<8x128xf32> to vector<128xf32>
    %49 = vector.shape_cast %48 : vector<128xf32> to vector<1x128xf32>
    %50 = vector.broadcast %49 : vector<1x128xf32> to vector<4x128xf32>
    %51 = arith.mulf %10, %50 : vector<4x128xf32>
    %cst_10 = arith.constant dense<0.000000e+00> : vector<4xf32>
    %52 = vector.multi_reduction <add>, %51, %cst_10 [1] : vector<4x128xf32> to vector<4xf32>
    %53 = vector.shape_cast %52 : vector<4xf32> to vector<4x1xf32>
    %cst_11 = arith.constant 3.906250e-03 : f32
    %54 = vector.broadcast %cst_11 : f32 to vector<4x1xf32>
    %55 = arith.mulf %53, %54 : vector<4x1xf32>
    %cst_12 = arith.constant 9.99999993E-9 : f32
    %56 = vector.broadcast %cst_12 : f32 to vector<4x1xf32>
    %57 = arith.addf %55, %56 : vector<4x1xf32>
    %58 = math.rsqrt %57 : vector<4x1xf32>
    %59 = vector.broadcast %58 : vector<4x1xf32> to vector<4x128xf32>
    %60 = arith.mulf %59, %10 : vector<4x128xf32>
    %cst_13 = arith.constant dense<0.000000e+00> : vector<128xf32>
    %61 = vector.multi_reduction <add>, %60, %cst_13 [0] : vector<4x128xf32> to vector<128xf32>
    %62 = vector.shape_cast %61 : vector<128xf32> to vector<1x128xf32>
    %63 = vector.broadcast %62 : vector<1x128xf32> to vector<8x128xf32>
    %64 = vector.broadcast %31 : vector<8x1xf32> to vector<8x128xf32>
    %65 = arith.mulf %63, %64 : vector<8x128xf32>
    %66 = arith.mulf %46, %65 : vector<8x128xf32>
    %67 = vector.broadcast %32 : vector<8x1xf32> to vector<8x128xf32>
    %68 = arith.addf %66, %67 : vector<8x128xf32>
    %c0_14 = arith.constant 0 : index
    %c0_15 = arith.constant 0 : index
    %69 = vector.load %arg3[%c0_14, %c0_15] : memref<8x8xf32, #tpu.memory_space<vmem>>, vector<8x8xf32>
    %cst_16 = arith.constant dense<0.000000e+00> : vector<8x128xf32>
    %70 = tpu.matmul %69, %68, %cst_16 {dimension_numbers = #tpu.dot_dimension_numbers<[1], [0], [0], [1], [0, 0, 1, 1], [], []>} : vector<8x8xf32>, vector<8x128xf32>, vector<8x128xf32> -> vector<8x128xf32>
    %71 = vector.extract_strided_slice %29 {offsets = [0, 2], sizes = [8, 1], strides = [1, 1]} : vector<8x4xf32> to vector<8x1xf32>
    %72 = vector.broadcast %71 : vector<8x1xf32> to vector<8x128xf32>
    %73 = arith.addf %70, %72 : vector<8x128xf32>
    %cst_17 = arith.constant 0.000000e+00 : f32
    %74 = vector.broadcast %cst_17 : f32 to vector<8x128xf32>
    %c0_18 = arith.constant 0 : index
    %c0_19 = arith.constant 0 : index
    %c0_20 = arith.constant 0 : index
    %75 = vector.load %arg7[%c0_18, %c0_19, %c0_20] : memref<2x16x16xf32, #tpu.memory_space<vmem>>, vector<1x16x16xf32>
    %76 = vector.shape_cast %75 : vector<1x16x16xf32> to vector<16x16xf32>
    %c0_21 = arith.constant 0 : index
    %c0_22 = arith.constant 0 : index
    %c0_23 = arith.constant 0 : index
    %77 = vector.load %arg5[%c0_21, %c0_22, %c0_23] : memref<2x16x8xf32, #tpu.memory_space<vmem>>, vector<1x16x8xf32>
    %78 = vector.shape_cast %77 : vector<1x16x8xf32> to vector<16x8xf32>
    %cst_24 = arith.constant dense<0.000000e+00> : vector<16x128xf32>
    %79 = tpu.matmul %78, %73, %cst_24 {dimension_numbers = #tpu.dot_dimension_numbers<[1], [0], [0], [1], [0, 0, 1, 1], [], []>} : vector<16x8xf32>, vector<8x128xf32>, vector<16x128xf32> -> vector<16x128xf32>
    %80 = vector.extract_strided_slice %76 {offsets = [0, 3], sizes = [16, 1], strides = [1, 1]} : vector<16x16xf32> to vector<16x1xf32>
    %81 = vector.broadcast %80 : vector<16x1xf32> to vector<16x128xf32>
    %82 = arith.addf %79, %81 : vector<16x128xf32>
    %c0_25 = arith.constant 0 : index
    %83 = memref.load %arg0[%c0_25] : memref<5xf32, #tpu.memory_space<smem>>
    %cst_26 = arith.constant 0.000000e+00 : f32
    %84 = vector.broadcast %cst_26 : f32 to vector<16x128xf32>
    %85 = arith.cmpf oge, %82, %84 : vector<16x128xf32>
    %86 = vector.broadcast %83 : f32 to vector<16x128xf32>
    %87 = arith.mulf %86, %82 : vector<16x128xf32>
    %88 = arith.select %85, %82, %87 : vector<16x128xi1>, vector<16x128xf32>
    %89 = vector.extract_strided_slice %76 {offsets = [0, 4], sizes = [16, 1], strides = [1, 1]} : vector<16x16xf32> to vector<16x1xf32>
    %90 = vector.extract_strided_slice %76 {offsets = [0, 5], sizes = [16, 1], strides = [1, 1]} : vector<16x16xf32> to vector<16x1xf32>
    %cst_27 = arith.constant dense<0.000000e+00> : vector<128xf32>
    %91 = vector.multi_reduction <add>, %88, %cst_27 [0] : vector<16x128xf32> to vector<128xf32>
    %92 = vector.shape_cast %91 : vector<128xf32> to vector<1x128xf32>
    %93 = vector.broadcast %92 : vector<1x128xf32> to vector<4x128xf32>
    %94 = arith.mulf %10, %93 : vector<4x128xf32>
    %cst_28 = arith.constant dense<0.000000e+00> : vector<4xf32>
    %95 = vector.multi_reduction <add>, %94, %cst_28 [1] : vector<4x128xf32> to vector<4xf32>
    %96 = vector.shape_cast %95 : vector<4xf32> to vector<4x1xf32>
    %cst_29 = arith.constant 0.001953125 : f32
    %97 = vector.broadcast %cst_29 : f32 to vector<4x1xf32>
    %98 = arith.mulf %96, %97 : vector<4x1xf32>
    %99 = vector.broadcast %98 : vector<4x1xf32> to vector<4x128xf32>
    %100 = arith.mulf %99, %10 : vector<4x128xf32>
    %cst_30 = arith.constant dense<0.000000e+00> : vector<128xf32>
    %101 = vector.multi_reduction <add>, %100, %cst_30 [0] : vector<4x128xf32> to vector<128xf32>
    %102 = vector.shape_cast %101 : vector<128xf32> to vector<1x128xf32>
    %103 = vector.broadcast %102 : vector<1x128xf32> to vector<16x128xf32>
    %104 = arith.subf %88, %103 : vector<16x128xf32>
    %105 = arith.mulf %104, %104 : vector<16x128xf32>
    %cst_31 = arith.constant dense<0.000000e+00> : vector<128xf32>
    %106 = vector.multi_reduction <add>, %105, %cst_31 [0] : vector<16x128xf32> to vector<128xf32>
    %107 = vector.shape_cast %106 : vector<128xf32> to vector<1x128xf32>
    %108 = vector.broadcast %107 : vector<1x128xf32> to vector<4x128xf32>
    %109 = arith.mulf %10, %108 : vector<4x128xf32>
    %cst_32 = arith.constant dense<0.000000e+00> : vector<4xf32>
    %110 = vector.multi_reduction <add>, %109, %cst_32 [1] : vector<4x128xf32> to vector<4xf32>
    %111 = vector.shape_cast %110 : vector<4xf32> to vector<4x1xf32>
    %cst_33 = arith.constant 0.001953125 : f32
    %112 = vector.broadcast %cst_33 : f32 to vector<4x1xf32>
    %113 = arith.mulf %111, %112 : vector<4x1xf32>
    %cst_34 = arith.constant 9.99999993E-9 : f32
    %114 = vector.broadcast %cst_34 : f32 to vector<4x1xf32>
    %115 = arith.addf %113, %114 : vector<4x1xf32>
    %116 = math.rsqrt %115 : vector<4x1xf32>
    %117 = vector.broadcast %116 : vector<4x1xf32> to vector<4x128xf32>
    %118 = arith.mulf %117, %10 : vector<4x128xf32>
    %cst_35 = arith.constant dense<0.000000e+00> : vector<128xf32>
    %119 = vector.multi_reduction <add>, %118, %cst_35 [0] : vector<4x128xf32> to vector<128xf32>
    %120 = vector.shape_cast %119 : vector<128xf32> to vector<1x128xf32>
    %121 = vector.broadcast %120 : vector<1x128xf32> to vector<16x128xf32>
    %122 = vector.broadcast %89 : vector<16x1xf32> to vector<16x128xf32>
    %123 = arith.mulf %121, %122 : vector<16x128xf32>
    %124 = arith.mulf %104, %123 : vector<16x128xf32>
    %125 = vector.broadcast %90 : vector<16x1xf32> to vector<16x128xf32>
    %126 = arith.addf %124, %125 : vector<16x128xf32>
    %cst_36 = arith.constant 1.000000e+00 : f32
    %127 = vector.broadcast %cst_36 : f32 to vector<1x128xf32>
    %128 = arith.cmpf oge, %19, %127 : vector<1x128xf32>
    %129 = arith.extui %128 : vector<1x128xi1> to vector<1x128xi32>
    %130 = arith.sitofp %129 : vector<1x128xi32> to vector<1x128xf32>
    %cst_37 = arith.constant 3.000000e+01 : f32
    %131 = vector.broadcast %cst_37 : f32 to vector<1x128xf32>
    %132 = arith.cmpf ole, %19, %131 : vector<1x128xf32>
    %133 = arith.extui %132 : vector<1x128xi1> to vector<1x128xi32>
    %134 = arith.sitofp %133 : vector<1x128xi32> to vector<1x128xf32>
    %135 = vector.extract_strided_slice %76 {offsets = [0, 0], sizes = [16, 1], strides = [1, 1]} : vector<16x16xf32> to vector<16x1xf32>
    %c1_i32_38 = arith.constant 1 : i32
    %136 = tpu.dynamic_rotate %126 by %c1_i32_38 dim 1 : vector<16x128xf32>, i32 -> vector<16x128xf32>
    %137 = vector.broadcast %130 : vector<1x128xf32> to vector<16x128xf32>
    %138 = arith.mulf %137, %136 : vector<16x128xf32>
    %139 = vector.broadcast %135 : vector<16x1xf32> to vector<16x128xf32>
    %140 = arith.mulf %139, %138 : vector<16x128xf32>
    %141 = vector.extract_strided_slice %76 {offsets = [0, 1], sizes = [16, 1], strides = [1, 1]} : vector<16x16xf32> to vector<16x1xf32>
    %142 = vector.broadcast %141 : vector<16x1xf32> to vector<16x128xf32>
    %143 = arith.mulf %142, %126 : vector<16x128xf32>
    %144 = arith.addf %140, %143 : vector<16x128xf32>
    %145 = vector.extract_strided_slice %76 {offsets = [0, 2], sizes = [16, 1], strides = [1, 1]} : vector<16x16xf32> to vector<16x1xf32>
    %c127_i32 = arith.constant 127 : i32
    %146 = tpu.dynamic_rotate %126 by %c127_i32 dim 1 : vector<16x128xf32>, i32 -> vector<16x128xf32>
    %147 = vector.broadcast %134 : vector<1x128xf32> to vector<16x128xf32>
    %148 = arith.mulf %147, %146 : vector<16x128xf32>
    %149 = vector.broadcast %145 : vector<16x1xf32> to vector<16x128xf32>
    %150 = arith.mulf %149, %148 : vector<16x128xf32>
    %151 = arith.addf %144, %150 : vector<16x128xf32>
    %152 = vector.extract_strided_slice %76 {offsets = [0, 6], sizes = [16, 1], strides = [1, 1]} : vector<16x16xf32> to vector<16x1xf32>
    %153 = vector.broadcast %152 : vector<16x1xf32> to vector<16x128xf32>
    %154 = arith.addf %151, %153 : vector<16x128xf32>
    %c1_i32_39 = arith.constant 1 : i32
    %155 = tpu.dynamic_rotate %154 by %c1_i32_39 dim 0 : vector<16x128xf32>, i32 -> vector<16x128xf32>
    %156 = arith.mulf %24, %155 : vector<16x128xf32>
    %c15_i32 = arith.constant 15 : i32
    %157 = tpu.dynamic_rotate %154 by %c15_i32 dim 0 : vector<16x128xf32>, i32 -> vector<16x128xf32>
    %158 = arith.mulf %28, %157 : vector<16x128xf32>
    %159 = tpu.concatenate %156, %154, %158 in 1 : vector<16x128xf32>, vector<16x128xf32>, vector<16x128xf32> -> vector<16x384xf32>
    %c0_40 = arith.constant 0 : index
    %c0_41 = arith.constant 0 : index
    %c0_42 = arith.constant 0 : index
    %160 = vector.load %arg8[%c0_40, %c0_41, %c0_42] : memref<2x384x32xf32, #tpu.memory_space<vmem>>, vector<1x384x32xf32>
    %161 = vector.shape_cast %160 : vector<1x384x32xf32> to vector<384x32xf32>
    %cst_43 = arith.constant dense<0.000000e+00> : vector<16x32xf32>
    %162 = tpu.matmul %159, %161, %cst_43 {dimension_numbers = #tpu.dot_dimension_numbers<[1], [0], [0], [1], [0, 0, 1, 1], [], []>} : vector<16x384xf32>, vector<384x32xf32>, vector<16x32xf32> -> vector<16x32xf32>
    %163 = vector.extract_strided_slice %76 {offsets = [0, 10], sizes = [4, 1], strides = [1, 1]} : vector<16x16xf32> to vector<4x1xf32>
    %164 = vector.broadcast %163 : vector<4x1xf32> to vector<4x128xf32>
    %165 = arith.mulf %164, %10 : vector<4x128xf32>
    %cst_44 = arith.constant dense<0.000000e+00> : vector<128xf32>
    %166 = vector.multi_reduction <add>, %165, %cst_44 [0] : vector<4x128xf32> to vector<128xf32>
    %167 = vector.shape_cast %166 : vector<128xf32> to vector<1x128xf32>
    %c0_45 = arith.constant 0 : index
    %c0_46 = arith.constant 0 : index
    %c0_47 = arith.constant 0 : index
    %168 = vector.load %arg9[%c0_45, %c0_46, %c0_47] : memref<2x32x128xf32, #tpu.memory_space<vmem>>, vector<1x32x128xf32>
    %169 = vector.shape_cast %168 : vector<1x32x128xf32> to vector<32x128xf32>
    %cst_48 = arith.constant dense<0.000000e+00> : vector<16x128xf32>
    %170 = tpu.matmul %162, %169, %cst_48 {dimension_numbers = #tpu.dot_dimension_numbers<[1], [0], [0], [1], [0, 0, 1, 1], [], []>} : vector<16x32xf32>, vector<32x128xf32>, vector<16x128xf32> -> vector<16x128xf32>
    %171 = vector.broadcast %167 : vector<1x128xf32> to vector<16x128xf32>
    %172 = arith.addf %170, %171 : vector<16x128xf32>
    %c2 = arith.constant 2 : index
    %173 = memref.load %arg0[%c2] : memref<5xf32, #tpu.memory_space<smem>>
    %cst_49 = arith.constant 0.000000e+00 : f32
    %174 = vector.broadcast %cst_49 : f32 to vector<16x128xf32>
    %175 = arith.cmpf oge, %172, %174 : vector<16x128xf32>
    %176 = vector.broadcast %173 : f32 to vector<16x128xf32>
    %177 = arith.mulf %176, %172 : vector<16x128xf32>
    %178 = arith.select %175, %172, %177 : vector<16x128xi1>, vector<16x128xf32>
    %179 = vector.extract_strided_slice %76 {offsets = [0, 7], sizes = [16, 1], strides = [1, 1]} : vector<16x16xf32> to vector<16x1xf32>
    %180 = vector.extract_strided_slice %76 {offsets = [0, 8], sizes = [16, 1], strides = [1, 1]} : vector<16x16xf32> to vector<16x1xf32>
    %cst_50 = arith.constant dense<0.000000e+00> : vector<128xf32>
    %181 = vector.multi_reduction <add>, %178, %cst_50 [0] : vector<16x128xf32> to vector<128xf32>
    %182 = vector.shape_cast %181 : vector<128xf32> to vector<1x128xf32>
    %183 = vector.broadcast %182 : vector<1x128xf32> to vector<4x128xf32>
    %184 = arith.mulf %10, %183 : vector<4x128xf32>
    %cst_51 = arith.constant dense<0.000000e+00> : vector<4xf32>
    %185 = vector.multi_reduction <add>, %184, %cst_51 [1] : vector<4x128xf32> to vector<4xf32>
    %186 = vector.shape_cast %185 : vector<4xf32> to vector<4x1xf32>
    %cst_52 = arith.constant 0.001953125 : f32
    %187 = vector.broadcast %cst_52 : f32 to vector<4x1xf32>
    %188 = arith.mulf %186, %187 : vector<4x1xf32>
    %189 = vector.broadcast %188 : vector<4x1xf32> to vector<4x128xf32>
    %190 = arith.mulf %189, %10 : vector<4x128xf32>
    %cst_53 = arith.constant dense<0.000000e+00> : vector<128xf32>
    %191 = vector.multi_reduction <add>, %190, %cst_53 [0] : vector<4x128xf32> to vector<128xf32>
    %192 = vector.shape_cast %191 : vector<128xf32> to vector<1x128xf32>
    %193 = vector.broadcast %192 : vector<1x128xf32> to vector<16x128xf32>
    %194 = arith.subf %178, %193 : vector<16x128xf32>
    %195 = arith.mulf %194, %194 : vector<16x128xf32>
    %cst_54 = arith.constant dense<0.000000e+00> : vector<128xf32>
    %196 = vector.multi_reduction <add>, %195, %cst_54 [0] : vector<16x128xf32> to vector<128xf32>
    %197 = vector.shape_cast %196 : vector<128xf32> to vector<1x128xf32>
    %198 = vector.broadcast %197 : vector<1x128xf32> to vector<4x128xf32>
    %199 = arith.mulf %10, %198 : vector<4x128xf32>
    %cst_55 = arith.constant dense<0.000000e+00> : vector<4xf32>
    %200 = vector.multi_reduction <add>, %199, %cst_55 [1] : vector<4x128xf32> to vector<4xf32>
    %201 = vector.shape_cast %200 : vector<4xf32> to vector<4x1xf32>
    %cst_56 = arith.constant 0.001953125 : f32
    %202 = vector.broadcast %cst_56 : f32 to vector<4x1xf32>
    %203 = arith.mulf %201, %202 : vector<4x1xf32>
    %cst_57 = arith.constant 9.99999993E-9 : f32
    %204 = vector.broadcast %cst_57 : f32 to vector<4x1xf32>
    %205 = arith.addf %203, %204 : vector<4x1xf32>
    %206 = math.rsqrt %205 : vector<4x1xf32>
    %207 = vector.broadcast %206 : vector<4x1xf32> to vector<4x128xf32>
    %208 = arith.mulf %207, %10 : vector<4x128xf32>
    %cst_58 = arith.constant dense<0.000000e+00> : vector<128xf32>
    %209 = vector.multi_reduction <add>, %208, %cst_58 [0] : vector<4x128xf32> to vector<128xf32>
    %210 = vector.shape_cast %209 : vector<128xf32> to vector<1x128xf32>
    %211 = vector.broadcast %210 : vector<1x128xf32> to vector<16x128xf32>
    %212 = vector.broadcast %179 : vector<16x1xf32> to vector<16x128xf32>
    %213 = arith.mulf %211, %212 : vector<16x128xf32>
    %214 = arith.mulf %194, %213 : vector<16x128xf32>
    %215 = vector.broadcast %180 : vector<16x1xf32> to vector<16x128xf32>
    %216 = arith.addf %214, %215 : vector<16x128xf32>
    %c0_59 = arith.constant 0 : index
    %c0_60 = arith.constant 0 : index
    %c0_61 = arith.constant 0 : index
    %217 = vector.load %arg6[%c0_59, %c0_60, %c0_61] : memref<2x16x16xf32, #tpu.memory_space<vmem>>, vector<1x16x16xf32>
    %218 = vector.shape_cast %217 : vector<1x16x16xf32> to vector<16x16xf32>
    %cst_62 = arith.constant dense<0.000000e+00> : vector<16x128xf32>
    %219 = tpu.matmul %218, %216, %cst_62 {dimension_numbers = #tpu.dot_dimension_numbers<[1], [0], [0], [1], [0, 0, 1, 1], [], []>} : vector<16x16xf32>, vector<16x128xf32>, vector<16x128xf32> -> vector<16x128xf32>
    %220 = vector.extract_strided_slice %76 {offsets = [0, 9], sizes = [16, 1], strides = [1, 1]} : vector<16x16xf32> to vector<16x1xf32>
    %221 = vector.broadcast %220 : vector<16x1xf32> to vector<16x128xf32>
    %222 = arith.addf %219, %221 : vector<16x128xf32>
    %223 = vector.extract_strided_slice %222 {offsets = [0, 0], sizes = [8, 128], strides = [1, 1]} : vector<16x128xf32> to vector<8x128xf32>
    %224 = arith.addf %73, %223 : vector<8x128xf32>
    %225 = vector.extract_strided_slice %222 {offsets = [8, 0], sizes = [8, 128], strides = [1, 1]} : vector<16x128xf32> to vector<8x128xf32>
    %226 = arith.addf %74, %225 : vector<8x128xf32>
    %c1 = arith.constant 1 : index
    %c0_63 = arith.constant 0 : index
    %c0_64 = arith.constant 0 : index
    %227 = vector.load %arg7[%c1, %c0_63, %c0_64] : memref<2x16x16xf32, #tpu.memory_space<vmem>>, vector<1x16x16xf32>
    %228 = vector.shape_cast %227 : vector<1x16x16xf32> to vector<16x16xf32>
    %c1_65 = arith.constant 1 : index
    %c0_66 = arith.constant 0 : index
    %c0_67 = arith.constant 0 : index
    %229 = vector.load %arg5[%c1_65, %c0_66, %c0_67] : memref<2x16x8xf32, #tpu.memory_space<vmem>>, vector<1x16x8xf32>
    %230 = vector.shape_cast %229 : vector<1x16x8xf32> to vector<16x8xf32>
    %cst_68 = arith.constant dense<0.000000e+00> : vector<16x128xf32>
    %231 = tpu.matmul %230, %224, %cst_68 {dimension_numbers = #tpu.dot_dimension_numbers<[1], [0], [0], [1], [0, 0, 1, 1], [], []>} : vector<16x8xf32>, vector<8x128xf32>, vector<16x128xf32> -> vector<16x128xf32>
    %232 = vector.extract_strided_slice %228 {offsets = [0, 3], sizes = [16, 1], strides = [1, 1]} : vector<16x16xf32> to vector<16x1xf32>
    %233 = vector.broadcast %232 : vector<16x1xf32> to vector<16x128xf32>
    %234 = arith.addf %231, %233 : vector<16x128xf32>
    %c1_69 = arith.constant 1 : index
    %235 = memref.load %arg0[%c1_69] : memref<5xf32, #tpu.memory_space<smem>>
    %cst_70 = arith.constant 0.000000e+00 : f32
    %236 = vector.broadcast %cst_70 : f32 to vector<16x128xf32>
    %237 = arith.cmpf oge, %234, %236 : vector<16x128xf32>
    %238 = vector.broadcast %235 : f32 to vector<16x128xf32>
    %239 = arith.mulf %238, %234 : vector<16x128xf32>
    %240 = arith.select %237, %234, %239 : vector<16x128xi1>, vector<16x128xf32>
    %241 = vector.extract_strided_slice %228 {offsets = [0, 4], sizes = [16, 1], strides = [1, 1]} : vector<16x16xf32> to vector<16x1xf32>
    %242 = vector.extract_strided_slice %228 {offsets = [0, 5], sizes = [16, 1], strides = [1, 1]} : vector<16x16xf32> to vector<16x1xf32>
    %cst_71 = arith.constant dense<0.000000e+00> : vector<128xf32>
    %243 = vector.multi_reduction <add>, %240, %cst_71 [0] : vector<16x128xf32> to vector<128xf32>
    %244 = vector.shape_cast %243 : vector<128xf32> to vector<1x128xf32>
    %245 = vector.broadcast %244 : vector<1x128xf32> to vector<4x128xf32>
    %246 = arith.mulf %10, %245 : vector<4x128xf32>
    %cst_72 = arith.constant dense<0.000000e+00> : vector<4xf32>
    %247 = vector.multi_reduction <add>, %246, %cst_72 [1] : vector<4x128xf32> to vector<4xf32>
    %248 = vector.shape_cast %247 : vector<4xf32> to vector<4x1xf32>
    %cst_73 = arith.constant 0.001953125 : f32
    %249 = vector.broadcast %cst_73 : f32 to vector<4x1xf32>
    %250 = arith.mulf %248, %249 : vector<4x1xf32>
    %251 = vector.broadcast %250 : vector<4x1xf32> to vector<4x128xf32>
    %252 = arith.mulf %251, %10 : vector<4x128xf32>
    %cst_74 = arith.constant dense<0.000000e+00> : vector<128xf32>
    %253 = vector.multi_reduction <add>, %252, %cst_74 [0] : vector<4x128xf32> to vector<128xf32>
    %254 = vector.shape_cast %253 : vector<128xf32> to vector<1x128xf32>
    %255 = vector.broadcast %254 : vector<1x128xf32> to vector<16x128xf32>
    %256 = arith.subf %240, %255 : vector<16x128xf32>
    %257 = arith.mulf %256, %256 : vector<16x128xf32>
    %cst_75 = arith.constant dense<0.000000e+00> : vector<128xf32>
    %258 = vector.multi_reduction <add>, %257, %cst_75 [0] : vector<16x128xf32> to vector<128xf32>
    %259 = vector.shape_cast %258 : vector<128xf32> to vector<1x128xf32>
    %260 = vector.broadcast %259 : vector<1x128xf32> to vector<4x128xf32>
    %261 = arith.mulf %10, %260 : vector<4x128xf32>
    %cst_76 = arith.constant dense<0.000000e+00> : vector<4xf32>
    %262 = vector.multi_reduction <add>, %261, %cst_76 [1] : vector<4x128xf32> to vector<4xf32>
    %263 = vector.shape_cast %262 : vector<4xf32> to vector<4x1xf32>
    %cst_77 = arith.constant 0.001953125 : f32
    %264 = vector.broadcast %cst_77 : f32 to vector<4x1xf32>
    %265 = arith.mulf %263, %264 : vector<4x1xf32>
    %cst_78 = arith.constant 9.99999993E-9 : f32
    %266 = vector.broadcast %cst_78 : f32 to vector<4x1xf32>
    %267 = arith.addf %265, %266 : vector<4x1xf32>
    %268 = math.rsqrt %267 : vector<4x1xf32>
    %269 = vector.broadcast %268 : vector<4x1xf32> to vector<4x128xf32>
    %270 = arith.mulf %269, %10 : vector<4x128xf32>
    %cst_79 = arith.constant dense<0.000000e+00> : vector<128xf32>
    %271 = vector.multi_reduction <add>, %270, %cst_79 [0] : vector<4x128xf32> to vector<128xf32>
    %272 = vector.shape_cast %271 : vector<128xf32> to vector<1x128xf32>
    %273 = vector.broadcast %272 : vector<1x128xf32> to vector<16x128xf32>
    %274 = vector.broadcast %241 : vector<16x1xf32> to vector<16x128xf32>
    %275 = arith.mulf %273, %274 : vector<16x128xf32>
    %276 = arith.mulf %256, %275 : vector<16x128xf32>
    %277 = vector.broadcast %242 : vector<16x1xf32> to vector<16x128xf32>
    %278 = arith.addf %276, %277 : vector<16x128xf32>
    %cst_80 = arith.constant 2.000000e+00 : f32
    %279 = vector.broadcast %cst_80 : f32 to vector<1x128xf32>
    %280 = arith.cmpf oge, %19, %279 : vector<1x128xf32>
    %281 = arith.extui %280 : vector<1x128xi1> to vector<1x128xi32>
    %282 = arith.sitofp %281 : vector<1x128xi32> to vector<1x128xf32>
    %cst_81 = arith.constant 2.900000e+01 : f32
    %283 = vector.broadcast %cst_81 : f32 to vector<1x128xf32>
    %284 = arith.cmpf ole, %19, %283 : vector<1x128xf32>
    %285 = arith.extui %284 : vector<1x128xi1> to vector<1x128xi32>
    %286 = arith.sitofp %285 : vector<1x128xi32> to vector<1x128xf32>
    %287 = vector.extract_strided_slice %228 {offsets = [0, 0], sizes = [16, 1], strides = [1, 1]} : vector<16x16xf32> to vector<16x1xf32>
    %c2_i32 = arith.constant 2 : i32
    %288 = tpu.dynamic_rotate %278 by %c2_i32 dim 1 : vector<16x128xf32>, i32 -> vector<16x128xf32>
    %289 = vector.broadcast %282 : vector<1x128xf32> to vector<16x128xf32>
    %290 = arith.mulf %289, %288 : vector<16x128xf32>
    %291 = vector.broadcast %287 : vector<16x1xf32> to vector<16x128xf32>
    %292 = arith.mulf %291, %290 : vector<16x128xf32>
    %293 = vector.extract_strided_slice %228 {offsets = [0, 1], sizes = [16, 1], strides = [1, 1]} : vector<16x16xf32> to vector<16x1xf32>
    %294 = vector.broadcast %293 : vector<16x1xf32> to vector<16x128xf32>
    %295 = arith.mulf %294, %278 : vector<16x128xf32>
    %296 = arith.addf %292, %295 : vector<16x128xf32>
    %297 = vector.extract_strided_slice %228 {offsets = [0, 2], sizes = [16, 1], strides = [1, 1]} : vector<16x16xf32> to vector<16x1xf32>
    %c126_i32 = arith.constant 126 : i32
    %298 = tpu.dynamic_rotate %278 by %c126_i32 dim 1 : vector<16x128xf32>, i32 -> vector<16x128xf32>
    %299 = vector.broadcast %286 : vector<1x128xf32> to vector<16x128xf32>
    %300 = arith.mulf %299, %298 : vector<16x128xf32>
    %301 = vector.broadcast %297 : vector<16x1xf32> to vector<16x128xf32>
    %302 = arith.mulf %301, %300 : vector<16x128xf32>
    %303 = arith.addf %296, %302 : vector<16x128xf32>
    %304 = vector.extract_strided_slice %228 {offsets = [0, 6], sizes = [16, 1], strides = [1, 1]} : vector<16x16xf32> to vector<16x1xf32>
    %305 = vector.broadcast %304 : vector<16x1xf32> to vector<16x128xf32>
    %306 = arith.addf %303, %305 : vector<16x128xf32>
    %c1_i32_82 = arith.constant 1 : i32
    %307 = tpu.dynamic_rotate %306 by %c1_i32_82 dim 0 : vector<16x128xf32>, i32 -> vector<16x128xf32>
    %308 = arith.mulf %24, %307 : vector<16x128xf32>
    %c15_i32_83 = arith.constant 15 : i32
    %309 = tpu.dynamic_rotate %306 by %c15_i32_83 dim 0 : vector<16x128xf32>, i32 -> vector<16x128xf32>
    %310 = arith.mulf %28, %309 : vector<16x128xf32>
    %311 = tpu.concatenate %308, %306, %310 in 1 : vector<16x128xf32>, vector<16x128xf32>, vector<16x128xf32> -> vector<16x384xf32>
    %c1_84 = arith.constant 1 : index
    %c0_85 = arith.constant 0 : index
    %c0_86 = arith.constant 0 : index
    %312 = vector.load %arg8[%c1_84, %c0_85, %c0_86] : memref<2x384x32xf32, #tpu.memory_space<vmem>>, vector<1x384x32xf32>
    %313 = vector.shape_cast %312 : vector<1x384x32xf32> to vector<384x32xf32>
    %cst_87 = arith.constant dense<0.000000e+00> : vector<16x32xf32>
    %314 = tpu.matmul %311, %313, %cst_87 {dimension_numbers = #tpu.dot_dimension_numbers<[1], [0], [0], [1], [0, 0, 1, 1], [], []>} : vector<16x384xf32>, vector<384x32xf32>, vector<16x32xf32> -> vector<16x32xf32>
    %315 = vector.extract_strided_slice %228 {offsets = [0, 10], sizes = [4, 1], strides = [1, 1]} : vector<16x16xf32> to vector<4x1xf32>
    %316 = vector.broadcast %315 : vector<4x1xf32> to vector<4x128xf32>
    %317 = arith.mulf %316, %10 : vector<4x128xf32>
    %cst_88 = arith.constant dense<0.000000e+00> : vector<128xf32>
    %318 = vector.multi_reduction <add>, %317, %cst_88 [0] : vector<4x128xf32> to vector<128xf32>
    %319 = vector.shape_cast %318 : vector<128xf32> to vector<1x128xf32>
    %c1_89 = arith.constant 1 : index
    %c0_90 = arith.constant 0 : index
    %c0_91 = arith.constant 0 : index
    %320 = vector.load %arg9[%c1_89, %c0_90, %c0_91] : memref<2x32x128xf32, #tpu.memory_space<vmem>>, vector<1x32x128xf32>
    %321 = vector.shape_cast %320 : vector<1x32x128xf32> to vector<32x128xf32>
    %cst_92 = arith.constant dense<0.000000e+00> : vector<16x128xf32>
    %322 = tpu.matmul %314, %321, %cst_92 {dimension_numbers = #tpu.dot_dimension_numbers<[1], [0], [0], [1], [0, 0, 1, 1], [], []>} : vector<16x32xf32>, vector<32x128xf32>, vector<16x128xf32> -> vector<16x128xf32>
    %323 = vector.broadcast %319 : vector<1x128xf32> to vector<16x128xf32>
    %324 = arith.addf %322, %323 : vector<16x128xf32>
    %c3 = arith.constant 3 : index
    %325 = memref.load %arg0[%c3] : memref<5xf32, #tpu.memory_space<smem>>
    %cst_93 = arith.constant 0.000000e+00 : f32
    %326 = vector.broadcast %cst_93 : f32 to vector<16x128xf32>
    %327 = arith.cmpf oge, %324, %326 : vector<16x128xf32>
    %328 = vector.broadcast %325 : f32 to vector<16x128xf32>
    %329 = arith.mulf %328, %324 : vector<16x128xf32>
    %330 = arith.select %327, %324, %329 : vector<16x128xi1>, vector<16x128xf32>
    %331 = vector.extract_strided_slice %228 {offsets = [0, 7], sizes = [16, 1], strides = [1, 1]} : vector<16x16xf32> to vector<16x1xf32>
    %332 = vector.extract_strided_slice %228 {offsets = [0, 8], sizes = [16, 1], strides = [1, 1]} : vector<16x16xf32> to vector<16x1xf32>
    %cst_94 = arith.constant dense<0.000000e+00> : vector<128xf32>
    %333 = vector.multi_reduction <add>, %330, %cst_94 [0] : vector<16x128xf32> to vector<128xf32>
    %334 = vector.shape_cast %333 : vector<128xf32> to vector<1x128xf32>
    %335 = vector.broadcast %334 : vector<1x128xf32> to vector<4x128xf32>
    %336 = arith.mulf %10, %335 : vector<4x128xf32>
    %cst_95 = arith.constant dense<0.000000e+00> : vector<4xf32>
    %337 = vector.multi_reduction <add>, %336, %cst_95 [1] : vector<4x128xf32> to vector<4xf32>
    %338 = vector.shape_cast %337 : vector<4xf32> to vector<4x1xf32>
    %cst_96 = arith.constant 0.001953125 : f32
    %339 = vector.broadcast %cst_96 : f32 to vector<4x1xf32>
    %340 = arith.mulf %338, %339 : vector<4x1xf32>
    %341 = vector.broadcast %340 : vector<4x1xf32> to vector<4x128xf32>
    %342 = arith.mulf %341, %10 : vector<4x128xf32>
    %cst_97 = arith.constant dense<0.000000e+00> : vector<128xf32>
    %343 = vector.multi_reduction <add>, %342, %cst_97 [0] : vector<4x128xf32> to vector<128xf32>
    %344 = vector.shape_cast %343 : vector<128xf32> to vector<1x128xf32>
    %345 = vector.broadcast %344 : vector<1x128xf32> to vector<16x128xf32>
    %346 = arith.subf %330, %345 : vector<16x128xf32>
    %347 = arith.mulf %346, %346 : vector<16x128xf32>
    %cst_98 = arith.constant dense<0.000000e+00> : vector<128xf32>
    %348 = vector.multi_reduction <add>, %347, %cst_98 [0] : vector<16x128xf32> to vector<128xf32>
    %349 = vector.shape_cast %348 : vector<128xf32> to vector<1x128xf32>
    %350 = vector.broadcast %349 : vector<1x128xf32> to vector<4x128xf32>
    %351 = arith.mulf %10, %350 : vector<4x128xf32>
    %cst_99 = arith.constant dense<0.000000e+00> : vector<4xf32>
    %352 = vector.multi_reduction <add>, %351, %cst_99 [1] : vector<4x128xf32> to vector<4xf32>
    %353 = vector.shape_cast %352 : vector<4xf32> to vector<4x1xf32>
    %cst_100 = arith.constant 0.001953125 : f32
    %354 = vector.broadcast %cst_100 : f32 to vector<4x1xf32>
    %355 = arith.mulf %353, %354 : vector<4x1xf32>
    %cst_101 = arith.constant 9.99999993E-9 : f32
    %356 = vector.broadcast %cst_101 : f32 to vector<4x1xf32>
    %357 = arith.addf %355, %356 : vector<4x1xf32>
    %358 = math.rsqrt %357 : vector<4x1xf32>
    %359 = vector.broadcast %358 : vector<4x1xf32> to vector<4x128xf32>
    %360 = arith.mulf %359, %10 : vector<4x128xf32>
    %cst_102 = arith.constant dense<0.000000e+00> : vector<128xf32>
    %361 = vector.multi_reduction <add>, %360, %cst_102 [0] : vector<4x128xf32> to vector<128xf32>
    %362 = vector.shape_cast %361 : vector<128xf32> to vector<1x128xf32>
    %363 = vector.broadcast %362 : vector<1x128xf32> to vector<16x128xf32>
    %364 = vector.broadcast %331 : vector<16x1xf32> to vector<16x128xf32>
    %365 = arith.mulf %363, %364 : vector<16x128xf32>
    %366 = arith.mulf %346, %365 : vector<16x128xf32>
    %367 = vector.broadcast %332 : vector<16x1xf32> to vector<16x128xf32>
    %368 = arith.addf %366, %367 : vector<16x128xf32>
    %c1_103 = arith.constant 1 : index
    %c0_104 = arith.constant 0 : index
    %c0_105 = arith.constant 0 : index
    %369 = vector.load %arg6[%c1_103, %c0_104, %c0_105] : memref<2x16x16xf32, #tpu.memory_space<vmem>>, vector<1x16x16xf32>
    %370 = vector.shape_cast %369 : vector<1x16x16xf32> to vector<16x16xf32>
    %cst_106 = arith.constant dense<0.000000e+00> : vector<16x128xf32>
    %371 = tpu.matmul %370, %368, %cst_106 {dimension_numbers = #tpu.dot_dimension_numbers<[1], [0], [0], [1], [0, 0, 1, 1], [], []>} : vector<16x16xf32>, vector<16x128xf32>, vector<16x128xf32> -> vector<16x128xf32>
    %372 = vector.extract_strided_slice %228 {offsets = [0, 9], sizes = [16, 1], strides = [1, 1]} : vector<16x16xf32> to vector<16x1xf32>
    %373 = vector.broadcast %372 : vector<16x1xf32> to vector<16x128xf32>
    %374 = arith.addf %371, %373 : vector<16x128xf32>
    %375 = vector.extract_strided_slice %374 {offsets = [8, 0], sizes = [8, 128], strides = [1, 1]} : vector<16x128xf32> to vector<8x128xf32>
    %376 = arith.addf %226, %375 : vector<8x128xf32>
    %c0_107 = arith.constant 0 : index
    %c0_108 = arith.constant 0 : index
    %377 = vector.load %arg4[%c0_107, %c0_108] : memref<8x8xf32, #tpu.memory_space<vmem>>, vector<8x8xf32>
    %c4 = arith.constant 4 : index
    %378 = memref.load %arg0[%c4] : memref<5xf32, #tpu.memory_space<smem>>
    %cst_109 = arith.constant 0.000000e+00 : f32
    %379 = vector.broadcast %cst_109 : f32 to vector<8x128xf32>
    %380 = arith.cmpf oge, %376, %379 : vector<8x128xf32>
    %381 = vector.broadcast %378 : f32 to vector<8x128xf32>
    %382 = arith.mulf %381, %376 : vector<8x128xf32>
    %383 = arith.select %380, %376, %382 : vector<8x128xi1>, vector<8x128xf32>
    %cst_110 = arith.constant dense<0.000000e+00> : vector<8x128xf32>
    %384 = tpu.matmul %377, %383, %cst_110 {dimension_numbers = #tpu.dot_dimension_numbers<[1], [0], [0], [1], [0, 0, 1, 1], [], []>} : vector<8x8xf32>, vector<8x128xf32>, vector<8x128xf32> -> vector<8x128xf32>
    %385 = vector.extract_strided_slice %29 {offsets = [0, 3], sizes = [8, 1], strides = [1, 1]} : vector<8x4xf32> to vector<8x1xf32>
    %386 = vector.broadcast %385 : vector<8x1xf32> to vector<8x128xf32>
    %387 = arith.addf %384, %386 : vector<8x128xf32>
    %c0_111 = arith.constant 0 : index
    %c0_112 = arith.constant 0 : index
    %388 = vector.load %arg10[%c0_111, %c0_112] : memref<8x128xf32, #tpu.memory_space<vmem>>, vector<8x128xf32>
    tpu.vector_store %arg10[%c0_111, %c0_112], %387 {strides = array<i32>} : memref<8x128xf32, #tpu.memory_space<vmem>>, vector<8x128xf32>,
    return
  }
}

</mosaic_0001>

<llo_original>
// kernel: forward.1
$region0: #{forward.1}
  #allocation0 [shape = 'u32[]', space=smem, size = 0x4, offset = 0x4, fixed_abs, tag = 'smem constant byte address 0x4 - core index']
  #allocation1 [shape = 'u32[144,128]{1,0:T(1,128)}', space=vmem, size = 0x12000, scoped, tag = 'internal scratch']
  %s0 = inlined_call_operand.vmem [shape: f32[5], index: 0, kind: input, shape index: {}]
  %s1 = inlined_call_operand.vmem [shape: f32[8,128], index: 1, kind: input, shape index: {}]
  %s2 = inlined_call_operand.vmem [shape: f32[8,4], index: 2, kind: input, shape index: {}]
  %s3 = inlined_call_operand.vmem [shape: f32[8,8], index: 3, kind: input, shape index: {}]
  %s4 = inlined_call_operand.vmem [shape: f32[8,8], index: 4, kind: input, shape index: {}]
  %s5 = inlined_call_operand.vmem [shape: f32[2,16,8], index: 5, kind: input, shape index: {}]
  %s6 = inlined_call_operand.vmem [shape: f32[2,16,16], index: 6, kind: input, shape index: {}]
  %s7 = inlined_call_operand.vmem [shape: f32[2,16,16], index: 7, kind: input, shape index: {}]
  %s8 = inlined_call_operand.vmem [shape: f32[2,384,32], index: 8, kind: input, shape index: {}]
  %s9 = inlined_call_operand.vmem [shape: f32[2,32,128], index: 9, kind: input, shape index: {}]
  %s10 = inlined_call_operand.vmem [shape: f32[8,128], index: 10, kind: output, shape index: {}]
  %s11 = sld [smem:[#allocation0]]
  $region54: #{forward.1} parent=0
    _
  %s13 = ssub.s32 1, %s11
  %s14 = scalar_select 0, %s13, %s11
  $region1: #{forward.1} parent=0
    #allocation2 [shape = 'u8[512]{0}', space=smem, size = 0x200, scoped, tag = 'input window, operand 0, single buffered']
    #allocation3 [shape = 's32[1]{0}', space=sflag, size = 0x4, scoped, tag = 'scoped memory for forward.1']
    %15 = vsyncpa [#allocation3], 0
    // Predicated region
    $region2: #{forward.1} parent=1 // pred_check
      _
    $region3: #{forward.1} parent=1 // pred_check_branch
      %17 = sbr.rel (0) target = $region5
    $region4: #{forward.1} parent=1 // pred_region
      %s19 = ssub.s32 16, 16
      %20 = vsyncadd [#allocation3], %s19
      %s22 = sshll.u32 %s0, 4
      %s23 = int_to_ptr.vmem [resolvable:$true] %s22
      %25 = dma.vmem_to_smem %s23, 16, [#allocation2], [#allocation3]
    $region5: #{forward.1} parent=1 // pred_fallthru
      _
    // Predicated region
    $region6: #{forward.1} parent=1 // pred_check
      _
    $region7: #{forward.1} parent=1 // pred_check_branch
      %27 = sbr.rel (0) target = $region9
    $region8: #{forward.1} parent=1 // pred_region
      _
    $region9: #{forward.1} parent=1 // pred_fallthru
      _
    // Predicated region
    $region10: #{forward.1} parent=1 // pred_check
      _
    $region11: #{forward.1} parent=1 // pred_check_branch
      %29 = sbr.rel (0) target = $region13
    $region12: #{forward.1} parent=1 // pred_region
      _
    $region13: #{forward.1} parent=1 // pred_fallthru
      _
    // Predicated region
    $region14: #{forward.1} parent=1 // pred_check
      _
    $region15: #{forward.1} parent=1 // pred_check_branch
      %31 = sbr.rel (0) target = $region17
    $region16: #{forward.1} parent=1 // pred_region
      _
    $region17: #{forward.1} parent=1 // pred_fallthru
      _
    // Predicated region
    $region18: #{forward.1} parent=1 // pred_check
      _
    $region19: #{forward.1} parent=1 // pred_check_branch
      %33 = sbr.rel (0) target = $region21
    $region20: #{forward.1} parent=1 // pred_region
      _
    $region21: #{forward.1} parent=1 // pred_fallthru
      _
    // Predicated region
    $region22: #{forward.1} parent=1 // pred_check
      _
    $region23: #{forward.1} parent=1 // pred_check_branch
      %35 = sbr.rel (0) target = $region25
    $region24: #{forward.1} parent=1 // pred_region
      _
    $region25: #{forward.1} parent=1 // pred_fallthru
      _
    // Predicated region
    $region26: #{forward.1} parent=1 // pred_check
      _
    $region27: #{forward.1} parent=1 // pred_check_branch
      %37 = sbr.rel (0) target = $region29
    $region28: #{forward.1} parent=1 // pred_region
      _
    $region29: #{forward.1} parent=1 // pred_fallthru
      _
    // Predicated region
    $region30: #{forward.1} parent=1 // pred_check
      _
    $region31: #{forward.1} parent=1 // pred_check_branch
      %39 = sbr.rel (0) target = $region33
    $region32: #{forward.1} parent=1 // pred_region
      _
    $region33: #{forward.1} parent=1 // pred_fallthru
      _
    // Predicated region
    $region34: #{forward.1} parent=1 // pred_check
      _
    $region35: #{forward.1} parent=1 // pred_check_branch
      %41 = sbr.rel (0) target = $region37
    $region36: #{forward.1} parent=1 // pred_region
      _
    $region37: #{forward.1} parent=1 // pred_fallthru
      _
    // Predicated region
    $region38: #{forward.1} parent=1 // pred_check
      _
    $region39: #{forward.1} parent=1 // pred_check_branch
      %43 = sbr.rel (0) target = $region41
    $region40: #{forward.1} parent=1 // pred_region
      _
    $region41: #{forward.1} parent=1 // pred_fallthru
      _
    // Predicated region
    $region42: #{forward.1} parent=1 // pred_check
      _
    $region43: #{forward.1} parent=1 // pred_check_branch
      %45 = sbr.rel (0) target = $region45
    $region44: #{forward.1} parent=1 // pred_region
      %46 = dma.done [#allocation3], 16
    $region45: #{forward.1} parent=1 // pred_fallthru
      _
    %47 = sfence
    %v48 = vlaneseq
    %v49 = vand.u32 %v48, 127
    %v50 = vlaneseq
    %v51 = vshrl.u32 %v50, 7
    %v52 = vmul.u32 %v51, 32
    %vm53 = vcmp.ge.s32.totalorder %v49, %v52
    %v54 = vadd.s32 %v52, 32
    %vm55 = vcmp.lt.s32.totalorder %v49, %v54
    %vm56 = vmand %vm53, %vm55
    %v57 = vsel %vm56, 1, 0
    %v58 = vcvt.s32.f32 %v57
    %v59 = vcvt.s32.f32 %v49
    %v60 = vcvt.s32.f32 %v51
    %v61 = vmul.f32 %v60, %v58
    %vm62 = vcmask 1043456
    %v63 = vsel %vm62, %v61, 0.0
    %v64 = vrot.slane %v63, 4
    %v65 = vadd.f32 %v63, %v64
    %v66 = vrot.slane %v65, 2
    %v67 = vadd.f32 %v65, %v66
    %v68 = vrot.slane %v67, 1
    %v69 = vadd.f32 %v67, %v68
    %v70 = vmul.f32 %v69, 32.0
    %v71 = vsub.f32 %v59, %v70
    %v72 = vadd.s32 %v51, 8
    %vm73 = vcmp.ge.s32.totalorder %v51, 1
    %vm74 = vcmp.ge.s32.totalorder %v72, 1
    %v75 = vsel %vm73, 1, 0
    %v76 = vsel %vm74, 1, 0
    %v77 = vcvt.s32.f32 %v75
    %v78 = vcvt.s32.f32 %v76
    %vm79 = vcmp.le.s32.totalorder %v51, 14
    %vm80 = vcmp.le.s32.totalorder %v72, 14
    %v81 = vsel %vm79, 1, 0
    %v82 = vsel %vm80, 1, 0
    %v83 = vcvt.s32.f32 %v81
    %v84 = vcvt.s32.f32 %v82
    %v85 = vld [vmem:[%s2] sm:$0xff]
    %v86 = vld [vmem:[%s1] sm:$0xff]
    %v87 = vrot.slane %v86, 4
    %v88 = vadd.f32 %v86, %v87
    %v89 = vrot.slane %v88, 2
    %v90 = vadd.f32 %v88, %v89
    %v91 = vrot.slane %v90, 1
    %v92 = vadd.f32 %v90, %v91
    %v93 = vmul.f32 %v58, %v92
    %v94 = vsel %vm62, %v93, 0.0
    %95 = vadd.xlane.f32.xlu0 %v94
    %v96 = vpop.xlane.xlu0 %95
    %v97 = vmul.f32 %v96, 0.00390625
    %v98 = vmul.f32 %v97, %v58
    %v99 = vsel %vm62, %v98, 0.0
    %v100 = vrot.slane %v99, 4
    %v101 = vadd.f32 %v99, %v100
    %v102 = vrot.slane %v101, 2
    %v103 = vadd.f32 %v101, %v102
    %v104 = vrot.slane %v103, 1
    %v105 = vadd.f32 %v103, %v104
    %v106 = vsub.f32 %v86, %v105
    %v107 = vmul.f32 %v106, %v106
    %v108 = vrot.slane %v107, 4
    %v109 = vadd.f32 %v107, %v108
    %v110 = vrot.slane %v109, 2
    %v111 = vadd.f32 %v109, %v110
    %v112 = vrot.slane %v111, 1
    %v113 = vadd.f32 %v111, %v112
    %v114 = vmul.f32 %v58, %v113
    %v115 = vsel %vm62, %v114, 0.0
    %116 = vadd.xlane.f32.xlu0 %v115
    %v117 = vpop.xlane.xlu0 %116
    %v118 = vmul.f32 %v117, 0.00390625
    %v119 = vadd.f32 %v118, 1e-08
    %v120 = vrsqrt.pop %v119
    %v121 = vmul.f32 %v120, %v58
    %v122 = vsel %vm62, %v121, 0.0
    %v123 = vrot.slane %v122, 4
    %v124 = vadd.f32 %v122, %v123
    %v125 = vrot.slane %v124, 2
    %v126 = vadd.f32 %v124, %v125
    %v127 = vrot.slane %v126, 1
    %v128 = vadd.f32 %v126, %v127
    %130 = vset.pattern.permute.xlu0 0
    %131 = vperm.xlu0 %130, %v85
    %v132 = vpop.permute.xlu0 %131
    %v134 = vmul.f32 %v128, %v132
    %v135 = vmul.f32 %v106, %v134
    %136 = vset.pattern.permute.xlu0 1
    %137 = vperm.xlu0 %136, %v85
    %v138 = vpop.permute.xlu0 %137
    %v140 = vadd.f32 %v135, %v138
    %v141 = vld [vmem:[%s3] sm:$0xff]
    %142 = vset.pattern.permute.xlu0 2
    %143 = vperm.xlu0 %142, %v85
    %v144 = vpop.permute.xlu0 %143
    %vm146 = vcmask 64512
    %v148 = vsel %vm146, %v141, 0
    %150 = vmatprep.subr.mxu0 0.0
    %151 = vmatpush1.msra.mxu0 %v140
    %152 = vmatprep.subr.mxu0 0.0
    %153 = vmatpush1.msra.mxu0 0.0
    %154 = vmatprep.subr.mxu0 0.0
    %155 = vmatpush1.msra.mxu0 0.0
    %156 = vmatprep.subr.mxu0 0.0
    %157 = vmatpush1.msra.mxu0 0.0
    %158 = vmatprep.subr.mxu0 0.0
    %159 = vmatpush1.msra.mxu0 0.0
    %160 = vmatprep.subr.mxu0 0.0
    %161 = vmatpush1.msra.mxu0 0.0
    %162 = vmatprep.subr.mxu0 0.0
    %163 = vmatpush1.msra.mxu0 0.0
    %164 = vmatprep.subr.mxu0 0.0
    %165 = vmatpush1.msra.mxu0 0.0
    %166 = vmatprep.subr.mxu0 0.0
    %167 = vmatpush1.msra.mxu0 0.0
    %168 = vmatprep.subr.mxu0 0.0
    %169 = vmatpush1.msra.mxu0 0.0
    %170 = vmatprep.subr.mxu0 0.0
    %171 = vmatpush1.msra.mxu0 0.0
    %172 = vmatprep.subr.mxu0 0.0
    %173 = vmatpush1.msra.mxu0 0.0
    %174 = vmatprep.subr.mxu0 0.0
    %175 = vmatpush1.msra.mxu0 0.0
    %176 = vmatprep.subr.mxu0 0.0
    %177 = vmatpush1.msra.mxu0 0.0
    %178 = vmatprep.subr.mxu0 0.0
    %179 = vmatpush1.msra.mxu0 0.0
    %180 = vmatprep.subr.mxu0 0.0
    %181 = vmatpush1.msra.mxu0 0.0
    %182 = vmatprep.subr.mxu0 0.0
    %183 = vmatpush1.msra.mxu0 0.0
    %184 = vmatprep.subr.mxu0 0.0
    %185 = vmatpush1.msra.mxu0 0.0
    %186 = vmatprep.subr.mxu0 0.0
    %187 = vmatpush1.msra.mxu0 0.0
    %188 = vmatprep.subr.mxu0 0.0
    %189 = vmatpush1.msra.mxu0 0.0
    %190 = vmatprep.subr.mxu0 0.0
    %191 = vmatpush1.msra.mxu0 0.0
    %192 = vmatprep.subr.mxu0 0.0
    %193 = vmatpush1.msra.mxu0 0.0
    %194 = vmatprep.subr.mxu0 0.0
    %195 = vmatpush1.msra.mxu0 0.0
    %196 = vmatprep.subr.mxu0 0.0
    %197 = vmatpush1.msra.mxu0 0.0
    %198 = vmatprep.subr.mxu0 0.0
    %199 = vmatpush1.msra.mxu0 0.0
    %200 = vmatprep.subr.mxu0 0.0
    %201 = vmatpush1.msra.mxu0 0.0
    %202 = vmatprep.subr.mxu0 0.0
    %203 = vmatpush1.msra.mxu0 0.0
    %204 = vmatprep.subr.mxu0 0.0
    %205 = vmatpush1.msra.mxu0 0.0
    %206 = vmatprep.subr.mxu0 0.0
    %207 = vmatpush1.msra.mxu0 0.0
    %208 = vmatprep.subr.mxu0 0.0
    %209 = vmatpush1.msra.mxu0 0.0
    %210 = vmatprep.subr.mxu0 0.0
    %211 = vmatpush1.msra.mxu0 0.0
    %212 = vmatprep.subr.mxu0 0.0
    %213 = vmatpush1.msra.mxu0 0.0
    %214 = vmatprep.mubr.f32.mxu0 0.0
    %215 = vmatmul.mubr.f32.gmra.mrb[0].mxu0 %v148
    %v216 = vpop.f32.mrb[0].mxu0
    %v217 = vadd.f32 %v144, %v216
    %v218 = vpop.f32.mrb[0].mxu0
    %219 = vdwg.mxu0
    %v220 = vld [vmem:[%s7] sm:$0xff]
    %v221 = vld [vmem:[%s7 + $0x8] sm:$0xff]
    %v222 = vld [vmem:[%s5] sm:$0xff]
    %v223 = vld [vmem:[%s5 + $0x8] sm:$0xff]
    %225 = vset.pattern.permute.xlu0 3
    %226 = vperm.xlu0 %225, %v220
    %v227 = vpop.permute.xlu0 %226
    %230 = vset.pattern.permute.xlu0 3
    %231 = vperm.xlu0 %230, %v221
    %v232 = vpop.permute.xlu0 %231
    %v235 = vsel %vm146, %v222, 0
    %v238 = vsel %vm146, %v223, 0
    %240 = vmatprep.subr.mxu0 0.0
    %241 = vmatpush1.msra.mxu0 %v217
    %242 = vmatprep.subr.mxu0 0.0
    %243 = vmatpush1.msra.mxu0 0.0
    %244 = vmatprep.subr.mxu0 0.0
    %245 = vmatpush1.msra.mxu0 0.0
    %246 = vmatprep.subr.mxu0 0.0
    %247 = vmatpush1.msra.mxu0 0.0
    %248 = vmatprep.subr.mxu0 0.0
    %249 = vmatpush1.msra.mxu0 0.0
    %250 = vmatprep.subr.mxu0 0.0
    %251 = vmatpush1.msra.mxu0 0.0
    %252 = vmatprep.subr.mxu0 0.0
    %253 = vmatpush1.msra.mxu0 0.0
    %254 = vmatprep.subr.mxu0 0.0
    %255 = vmatpush1.msra.mxu0 0.0
    %256 = vmatprep.subr.mxu0 0.0
    %257 = vmatpush1.msra.mxu0 0.0
    %258 = vmatprep.subr.mxu0 0.0
    %259 = vmatpush1.msra.mxu0 0.0
    %260 = vmatprep.subr.mxu0 0.0
    %261 = vmatpush1.msra.mxu0 0.0
    %262 = vmatprep.subr.mxu0 0.0
    %263 = vmatpush1.msra.mxu0 0.0
    %264 = vmatprep.subr.mxu0 0.0
    %265 = vmatpush1.msra.mxu0 0.0
    %266 = vmatprep.subr.mxu0 0.0
    %267 = vmatpush1.msra.mxu0 0.0
    %268 = vmatprep.subr.mxu0 0.0
    %269 = vmatpush1.msra.mxu0 0.0
    %270 = vmatprep.subr.mxu0 0.0
    %271 = vmatpush1.msra.mxu0 0.0
    %272 = vmatprep.subr.mxu0 0.0
    %273 = vmatpush1.msra.mxu0 0.0
    %274 = vmatprep.subr.mxu0 0.0
    %275 = vmatpush1.msra.mxu0 0.0
    %276 = vmatprep.subr.mxu0 0.0
    %277 = vmatpush1.msra.mxu0 0.0
    %278 = vmatprep.subr.mxu0 0.0
    %279 = vmatpush1.msra.mxu0 0.0
    %280 = vmatprep.subr.mxu0 0.0
    %281 = vmatpush1.msra.mxu0 0.0
    %282 = vmatprep.subr.mxu0 0.0
    %283 = vmatpush1.msra.mxu0 0.0
    %284 = vmatprep.subr.mxu0 0.0
    %285 = vmatpush1.msra.mxu0 0.0
    %286 = vmatprep.subr.mxu0 0.0
    %287 = vmatpush1.msra.mxu0 0.0
    %288 = vmatprep.subr.mxu0 0.0
    %289 = vmatpush1.msra.mxu0 0.0
    %290 = vmatprep.subr.mxu0 0.0
    %291 = vmatpush1.msra.mxu0 0.0
    %292 = vmatprep.subr.mxu0 0.0
    %293 = vmatpush1.msra.mxu0 0.0
    %294 = vmatprep.subr.mxu0 0.0
    %295 = vmatpush1.msra.mxu0 0.0
    %296 = vmatprep.subr.mxu0 0.0
    %297 = vmatpush1.msra.mxu0 0.0
    %298 = vmatprep.subr.mxu0 0.0
    %299 = vmatpush1.msra.mxu0 0.0
    %300 = vmatprep.subr.mxu0 0.0
    %301 = vmatpush1.msra.mxu0 0.0
    %302 = vmatprep.subr.mxu0 0.0
    %303 = vmatpush1.msra.mxu0 0.0
    %304 = vmatprep.mubr.f32.mxu0 0.0
    %305 = vmatmul.mubr.f32.gmra.mrb[0].mxu0 %v235
    %v306 = vpop.f32.mrb[0].mxu0
    %v307 = vadd.f32 %v227, %v306
    %v308 = vpop.f32.mrb[0].mxu0
    %309 = vmatprep.mubr.f32.mxu0 0.0
    %310 = vmatmul.mubr.f32.gmra.mrb[0].mxu0 %v238
    %v311 = vpop.f32.mrb[0].mxu0
    %v312 = vadd.f32 %v232, %v311
    %v313 = vpop.f32.mrb[0].mxu0
    %314 = vdwg.mxu0
    %s315 = sld [smem:[#allocation2]]
    %vm316 = vcmp.ge.f32.partialorder %v307, 0.0
    %vm317 = vcmp.ge.f32.partialorder %v312, 0.0
    %v318 = vstv %s315
    %v319 = vmul.f32 %v318, %v307
    %v320 = vmul.f32 %v318, %v312
    %v321 = vsel %vm316, %v307, %v319
    %v322 = vsel %vm317, %v312, %v320
    %v323 = vadd.f32 %v321, %v322
    %v324 = vrot.slane %v323, 4
    %v325 = vadd.f32 %v323, %v324
    %v326 = vrot.slane %v325, 2
    %v327 = vadd.f32 %v325, %v326
    %v328 = vrot.slane %v327, 1
    %v329 = vadd.f32 %v327, %v328
    %v330 = vmul.f32 %v58, %v329
    %v331 = vsel %vm62, %v330, 0.0
    %332 = vadd.xlane.f32.xlu0 %v331
    %v333 = vpop.xlane.xlu0 %332
    %v334 = vmul.f32 %v333, 0.001953125
    %v335 = vmul.f32 %v334, %v58
    %v336 = vsel %vm62, %v335, 0.0
    %v337 = vrot.slane %v336, 4
    %v338 = vadd.f32 %v336, %v337
    %v339 = vrot.slane %v338, 2
    %v340 = vadd.f32 %v338, %v339
    %v341 = vrot.slane %v340, 1
    %v342 = vadd.f32 %v340, %v341
    %v343 = vsub.f32 %v321, %v342
    %v344 = vsub.f32 %v322, %v342
    %v345 = vmul.f32 %v343, %v343
    %v346 = vmul.f32 %v344, %v344
    %v347 = vadd.f32 %v345, %v346
    %v348 = vrot.slane %v347, 4
    %v349 = vadd.f32 %v347, %v348
    %v350 = vrot.slane %v349, 2
    %v351 = vadd.f32 %v349, %v350
    %v352 = vrot.slane %v351, 1
    %v353 = vadd.f32 %v351, %v352
    %v354 = vmul.f32 %v58, %v353
    %v355 = vsel %vm62, %v354, 0.0
    %356 = vadd.xlane.f32.xlu0 %v355
    %v357 = vpop.xlane.xlu0 %356
    %v358 = vmul.f32 %v357, 0.001953125
    %v359 = vadd.f32 %v358, 1e-08
    %v360 = vrsqrt.pop %v359
    %v361 = vmul.f32 %v360, %v58
    %v362 = vsel %vm62, %v361, 0.0
    %v363 = vrot.slane %v362, 4
    %v364 = vadd.f32 %v362, %v363
    %v365 = vrot.slane %v364, 2
    %v366 = vadd.f32 %v364, %v365
    %v367 = vrot.slane %v366, 1
    %v368 = vadd.f32 %v366, %v367
    %369 = vset.pattern.permute.xlu0 4
    %370 = vperm.xlu0 %369, %v220
    %v371 = vpop.permute.xlu0 %370
    %373 = vset.pattern.permute.xlu0 4
    %374 = vperm.xlu0 %373, %v221
    %v375 = vpop.permute.xlu0 %374
    %v377 = vmul.f32 %v368, %v371
    %v378 = vmul.f32 %v368, %v375
    %v379 = vmul.f32 %v343, %v377
    %v380 = vmul.f32 %v344, %v378
    %381 = vset.pattern.permute.xlu0 5
    %382 = vperm.xlu0 %381, %v220
    %v383 = vpop.permute.xlu0 %382
    %385 = vset.pattern.permute.xlu0 5
    %386 = vperm.xlu0 %385, %v221
    %v387 = vpop.permute.xlu0 %386
    %v389 = vadd.f32 %v379, %v383
    %v390 = vadd.f32 %v380, %v387
    %vm391 = vcmp.ge.f32.partialorder %v71, 1.0
    %v392 = vsel %vm391, 1, 0
    %v393 = vcvt.s32.f32 %v392
    %vm394 = vcmp.le.f32.partialorder %v71, 30.0
    %v395 = vsel %vm394, 1, 0
    %v396 = vcvt.s32.f32 %v395
    %397 = vrot.lane.b32.xlu0 %v389, 1
    %v398 = vpop.permute.xlu0 %397
    %399 = vrot.lane.b32.xlu0 %v390, 1
    %v400 = vpop.permute.xlu0 %399
    %v401 = vmul.f32 %v393, %v398
    %v402 = vmul.f32 %v393, %v400
    %403 = vset.pattern.permute.xlu0 0
    %404 = vperm.xlu0 %403, %v220
    %v405 = vpop.permute.xlu0 %404
    %407 = vset.pattern.permute.xlu0 0
    %408 = vperm.xlu0 %407, %v221
    %v409 = vpop.permute.xlu0 %408
    %v411 = vmul.f32 %v405, %v401
    %v412 = vmul.f32 %v409, %v402
    %413 = vset.pattern.permute.xlu0 1
    %414 = vperm.xlu0 %413, %v220
    %v415 = vpop.permute.xlu0 %414
    %417 = vset.pattern.permute.xlu0 1
    %418 = vperm.xlu0 %417, %v221
    %v419 = vpop.permute.xlu0 %418
    %v421 = vmul.f32 %v415, %v389
    %v422 = vmul.f32 %v419, %v390
    %v423 = vadd.f32 %v411, %v421
    %v424 = vadd.f32 %v412, %v422
    %425 = vrot.lane.b32.xlu0 %v389, 127
    %v426 = vpop.permute.xlu0 %425
    %427 = vrot.lane.b32.xlu0 %v390, 127
    %v428 = vpop.permute.xlu0 %427
    %v429 = vmul.f32 %v396, %v426
    %v430 = vmul.f32 %v396, %v428
    %431 = vset.pattern.permute.xlu0 2
    %432 = vperm.xlu0 %431, %v220
    %v433 = vpop.permute.xlu0 %432
    %435 = vset.pattern.permute.xlu0 2
    %436 = vperm.xlu0 %435, %v221
    %v437 = vpop.permute.xlu0 %436
    %v439 = vmul.f32 %v433, %v429
    %v440 = vmul.f32 %v437, %v430
    %v441 = vadd.f32 %v423, %v439
    %v442 = vadd.f32 %v424, %v440
    %443 = vset.pattern.permute.xlu0 6
    %444 = vperm.xlu0 %443, %v220
    %v445 = vpop.permute.xlu0 %444
    %447 = vset.pattern.permute.xlu0 6
    %448 = vperm.xlu0 %447, %v221
    %v449 = vpop.permute.xlu0 %448
    %v451 = vadd.f32 %v441, %v445
    %v452 = vadd.f32 %v442, %v449
    %v453 = vrot.slane %v451, 7
    %v454 = vrot.slane %v452, 7
    %vm455 = vcmp.lt.s32.totalorder %v51, 1
    %v456 = vsel %vm455, %v453, %v454
    %v457 = vsel %vm455, %v454, %v453
    %v458 = vmul.f32 %v77, %v457
    %v459 = vmul.f32 %v78, %v456
    %v460 = vrot.slane %v451, 1
    %v461 = vrot.slane %v452, 1
    %vm462 = vcmp.lt.s32.totalorder %v51, 7
    %v463 = vsel %vm462, %v460, %v461
    %v464 = vsel %vm462, %v461, %v460
    %v465 = vmul.f32 %v83, %v463
    %v466 = vmul.f32 %v84, %v464
    %v467 = vld [vmem:[%s8] sm:$0xff]
    %v468 = vld [vmem:[%s8 + $0x8] sm:$0xff]
    %v469 = vld [vmem:[%s8 + $0x10] sm:$0xff]
    %v470 = vld [vmem:[%s8 + $0x18] sm:$0xff]
    %v471 = vld [vmem:[%s8 + $0x20] sm:$0xff]
    %v472 = vld [vmem:[%s8 + $0x28] sm:$0xff]
    %v473 = vld [vmem:[%s8 + $0x30] sm:$0xff]
    %v474 = vld [vmem:[%s8 + $0x38] sm:$0xff]
    %v475 = vld [vmem:[%s8 + $0x40] sm:$0xff]
    %v476 = vld [vmem:[%s8 + $0x48] sm:$0xff]
    %v477 = vld [vmem:[%s8 + $0x50] sm:$0xff]
    %v478 = vld [vmem:[%s8 + $0x58] sm:$0xff]
    %v479 = vld [vmem:[%s8 + $0x60] sm:$0xff]
    %v480 = vld [vmem:[%s8 + $0x68] sm:$0xff]
    %v481 = vld [vmem:[%s8 + $0x70] sm:$0xff]
    %v482 = vld [vmem:[%s8 + $0x78] sm:$0xff]
    %v483 = vld [vmem:[%s8 + $0x80] sm:$0xff]
    %v484 = vld [vmem:[%s8 + $0x88] sm:$0xff]
    %v485 = vld [vmem:[%s8 + $0x90] sm:$0xff]
    %v486 = vld [vmem:[%s8 + $0x98] sm:$0xff]
    %v487 = vld [vmem:[%s8 + $0xa0] sm:$0xff]
    %v488 = vld [vmem:[%s8 + $0xa8] sm:$0xff]
    %v489 = vld [vmem:[%s8 + $0xb0] sm:$0xff]
    %v490 = vld [vmem:[%s8 + $0xb8] sm:$0xff]
    %v491 = vld [vmem:[%s8 + $0xc0] sm:$0xff]
    %v492 = vld [vmem:[%s8 + $0xc8] sm:$0xff]
    %v493 = vld [vmem:[%s8 + $0xd0] sm:$0xff]
    %v494 = vld [vmem:[%s8 + $0xd8] sm:$0xff]
    %v495 = vld [vmem:[%s8 + $0xe0] sm:$0xff]
    %v496 = vld [vmem:[%s8 + $0xe8] sm:$0xff]
    %v497 = vld [vmem:[%s8 + $0xf0] sm:$0xff]
    %v498 = vld [vmem:[%s8 + $0xf8] sm:$0xff]
    %v499 = vld [vmem:[%s8 + $0x100] sm:$0xff]
    %v500 = vld [vmem:[%s8 + $0x108] sm:$0xff]
    %v501 = vld [vmem:[%s8 + $0x110] sm:$0xff]
    %v502 = vld [vmem:[%s8 + $0x118] sm:$0xff]
    %v503 = vld [vmem:[%s8 + $0x120] sm:$0xff]
    %v504 = vld [vmem:[%s8 + $0x128] sm:$0xff]
    %v505 = vld [vmem:[%s8 + $0x130] sm:$0xff]
    %v506 = vld [vmem:[%s8 + $0x138] sm:$0xff]
    %v507 = vld [vmem:[%s8 + $0x140] sm:$0xff]
    %v508 = vld [vmem:[%s8 + $0x148] sm:$0xff]
    %v509 = vld [vmem:[%s8 + $0x150] sm:$0xff]
    %v510 = vld [vmem:[%s8 + $0x158] sm:$0xff]
    %v511 = vld [vmem:[%s8 + $0x160] sm:$0xff]
    %v512 = vld [vmem:[%s8 + $0x168] sm:$0xff]
    %v513 = vld [vmem:[%s8 + $0x170] sm:$0xff]
    %v514 = vld [vmem:[%s8 + $0x178] sm:$0xff]
    %515 = vmatprep.subr.mxu0 0.0
    %516 = vmatpush1.msra.mxu0 %v467
    %517 = vmatprep.subr.mxu0 0.0
    %518 = vmatpush1.msra.mxu0 %v468
    %519 = vmatprep.subr.mxu0 0.0
    %520 = vmatpush1.msra.mxu0 %v469
    %521 = vmatprep.subr.mxu0 0.0
    %522 = vmatpush1.msra.mxu0 %v470
    %523 = vmatprep.subr.mxu0 0.0
    %524 = vmatpush1.msra.mxu0 %v471
    %525 = vmatprep.subr.mxu0 0.0
    %526 = vmatpush1.msra.mxu0 %v472
    %527 = vmatprep.subr.mxu0 0.0
    %528 = vmatpush1.msra.mxu0 %v473
    %529 = vmatprep.subr.mxu0 0.0
    %530 = vmatpush1.msra.mxu0 %v474
    %531 = vmatprep.subr.mxu0 0.0
    %532 = vmatpush1.msra.mxu0 %v475
    %533 = vmatprep.subr.mxu0 0.0
    %534 = vmatpush1.msra.mxu0 %v476
    %535 = vmatprep.subr.mxu0 0.0
    %536 = vmatpush1.msra.mxu0 %v477
    %537 = vmatprep.subr.mxu0 0.0
    %538 = vmatpush1.msra.mxu0 %v478
    %539 = vmatprep.subr.mxu0 0.0
    %540 = vmatpush1.msra.mxu0 %v479
    %541 = vmatprep.subr.mxu0 0.0
    %542 = vmatpush1.msra.mxu0 %v480
    %543 = vmatprep.subr.mxu0 0.0
    %544 = vmatpush1.msra.mxu0 %v481
    %545 = vmatprep.subr.mxu0 0.0
    %546 = vmatpush1.msra.mxu0 %v482
    %547 = vmatprep.subr.mxu0 0.0
    %548 = vmatpush1.msra.mxu0 %v483
    %549 = vmatprep.subr.mxu0 0.0
    %550 = vmatpush1.msra.mxu0 %v484
    %551 = vmatprep.subr.mxu0 0.0
    %552 = vmatpush1.msra.mxu0 %v485
    %553 = vmatprep.subr.mxu0 0.0
    %554 = vmatpush1.msra.mxu0 %v486
    %555 = vmatprep.subr.mxu0 0.0
    %556 = vmatpush1.msra.mxu0 %v487
    %557 = vmatprep.subr.mxu0 0.0
    %558 = vmatpush1.msra.mxu0 %v488
    %559 = vmatprep.subr.mxu0 0.0
    %560 = vmatpush1.msra.mxu0 %v489
    %561 = vmatprep.subr.mxu0 0.0
    %562 = vmatpush1.msra.mxu0 %v490
    %563 = vmatprep.subr.mxu0 0.0
    %564 = vmatpush1.msra.mxu0 %v491
    %565 = vmatprep.subr.mxu0 0.0
    %566 = vmatpush1.msra.mxu0 %v492
    %567 = vmatprep.subr.mxu0 0.0
    %568 = vmatpush1.msra.mxu0 %v493
    %569 = vmatprep.subr.mxu0 0.0
    %570 = vmatpush1.msra.mxu0 %v494
    %571 = vmatprep.subr.mxu0 0.0
    %572 = vmatpush1.msra.mxu0 %v495
    %573 = vmatprep.subr.mxu0 0.0
    %574 = vmatpush1.msra.mxu0 %v496
    %575 = vmatprep.subr.mxu0 0.0
    %576 = vmatpush1.msra.mxu0 %v497
    %577 = vmatprep.subr.mxu0 0.0
    %578 = vmatpush1.msra.mxu0 %v498
    %579 = vmatprep.mubr.f32.mxu0 %v451
    %580 = vmatmul.mubr.f32.gmra.mrb[0].mxu0 %v458
    %v581 = vpop.f32.mrb[0].mxu0
    %v582 = vadd.f32 0.0, %v581
    %v583 = vpop.f32.mrb[0].mxu0
    %584 = vmatprep.mubr.f32.mxu0 %v452
    %585 = vmatmul.mubr.f32.gmra.mrb[0].mxu0 %v459
    %v586 = vpop.f32.mrb[0].mxu0
    %v587 = vadd.f32 0.0, %v586
    %v588 = vpop.f32.mrb[0].mxu0
    %589 = vdwg.mxu0
    %590 = vmatprep.subr.mxu0 0.0
    %591 = vmatpush1.msra.mxu0 %v499
    %592 = vmatprep.subr.mxu0 0.0
    %593 = vmatpush1.msra.mxu0 %v500
    %594 = vmatprep.subr.mxu0 0.0
    %595 = vmatpush1.msra.mxu0 %v501
    %596 = vmatprep.subr.mxu0 0.0
    %597 = vmatpush1.msra.mxu0 %v502
    %598 = vmatprep.subr.mxu0 0.0
    %599 = vmatpush1.msra.mxu0 %v503
    %600 = vmatprep.subr.mxu0 0.0
    %601 = vmatpush1.msra.mxu0 %v504
    %602 = vmatprep.subr.mxu0 0.0
    %603 = vmatpush1.msra.mxu0 %v505
    %604 = vmatprep.subr.mxu0 0.0
    %605 = vmatpush1.msra.mxu0 %v506
    %606 = vmatprep.subr.mxu0 0.0
    %607 = vmatpush1.msra.mxu0 %v507
    %608 = vmatprep.subr.mxu0 0.0
    %609 = vmatpush1.msra.mxu0 %v508
    %610 = vmatprep.subr.mxu0 0.0
    %611 = vmatpush1.msra.mxu0 %v509
    %612 = vmatprep.subr.mxu0 0.0
    %613 = vmatpush1.msra.mxu0 %v510
    %614 = vmatprep.subr.mxu0 0.0
    %615 = vmatpush1.msra.mxu0 %v511
    %616 = vmatprep.subr.mxu0 0.0
    %617 = vmatpush1.msra.mxu0 %v512
    %618 = vmatprep.subr.mxu0 0.0
    %619 = vmatpush1.msra.mxu0 %v513
    %620 = vmatprep.subr.mxu0 0.0
    %621 = vmatpush1.msra.mxu0 %v514
    %622 = vmatprep.subr.mxu0 0.0
    %623 = vmatpush1.msra.mxu0 0.0
    %624 = vmatprep.subr.mxu0 0.0
    %625 = vmatpush1.msra.mxu0 0.0
    %626 = vmatprep.subr.mxu0 0.0
    %627 = vmatpush1.msra.mxu0 0.0
    %628 = vmatprep.subr.mxu0 0.0
    %629 = vmatpush1.msra.mxu0 0.0
    %630 = vmatprep.subr.mxu0 0.0
    %631 = vmatpush1.msra.mxu0 0.0
    %632 = vmatprep.subr.mxu0 0.0
    %633 = vmatpush1.msra.mxu0 0.0
    %634 = vmatprep.subr.mxu0 0.0
    %635 = vmatpush1.msra.mxu0 0.0
    %636 = vmatprep.subr.mxu0 0.0
    %637 = vmatpush1.msra.mxu0 0.0
    %638 = vmatprep.subr.mxu0 0.0
    %639 = vmatpush1.msra.mxu0 0.0
    %640 = vmatprep.subr.mxu0 0.0
    %641 = vmatpush1.msra.mxu0 0.0
    %642 = vmatprep.subr.mxu0 0.0
    %643 = vmatpush1.msra.mxu0 0.0
    %644 = vmatprep.subr.mxu0 0.0
    %645 = vmatpush1.msra.mxu0 0.0
    %646 = vmatprep.subr.mxu0 0.0
    %647 = vmatpush1.msra.mxu0 0.0
    %648 = vmatprep.subr.mxu0 0.0
    %649 = vmatpush1.msra.mxu0 0.0
    %650 = vmatprep.subr.mxu0 0.0
    %651 = vmatpush1.msra.mxu0 0.0
    %652 = vmatprep.subr.mxu0 0.0
    %653 = vmatpush1.msra.mxu0 0.0
    %654 = vmatprep.mubr.f32.mxu0 0.0
    %655 = vmatmul.mubr.f32.gmra.mrb[0].mxu0 %v465
    %v656 = vpop.f32.mrb[0].mxu0
    %v657 = vadd.f32 %v582, %v656
    %v658 = vpop.f32.mrb[0].mxu0
    %659 = vmatprep.mubr.f32.mxu0 0.0
    %660 = vmatmul.mubr.f32.gmra.mrb[0].mxu0 %v466
    %v661 = vpop.f32.mrb[0].mxu0
    %v662 = vadd.f32 %v587, %v661
    %v663 = vpop.f32.mrb[0].mxu0
    %664 = vdwg.mxu0
    %665 = vset.pattern.permute.xlu0 10
    %666 = vperm.xlu0 %665, %v220
    %v667 = vpop.permute.xlu0 %666
    %v669 = vmul.f32 %v667, %v58
    %v670 = vsel %vm62, %v669, 0.0
    %v671 = vrot.slane %v670, 4
    %v672 = vadd.f32 %v670, %v671
    %v673 = vrot.slane %v672, 2
    %v674 = vadd.f32 %v672, %v673
    %v675 = vrot.slane %v674, 1
    %v676 = vadd.f32 %v674, %v675
    %v677 = vld [vmem:[%s9] sm:$0xff]
    %v678 = vld [vmem:[%s9 + $0x8] sm:$0xff]
    %v679 = vld [vmem:[%s9 + $0x10] sm:$0xff]
    %v680 = vld [vmem:[%s9 + $0x18] sm:$0xff]
    %vm681 = vcmask 261120
    %v683 = vsel %vm681, %v657, 0
    %v686 = vsel %vm681, %v662, 0
    %688 = vmatprep.subr.mxu0 0.0
    %689 = vmatpush1.msra.mxu0 %v677
    %690 = vmatprep.subr.mxu0 0.0
    %691 = vmatpush1.msra.mxu0 %v678
    %692 = vmatprep.subr.mxu0 0.0
    %693 = vmatpush1.msra.mxu0 %v679
    %694 = vmatprep.subr.mxu0 0.0
    %695 = vmatpush1.msra.mxu0 %v680
    %696 = vmatprep.subr.mxu0 0.0
    %697 = vmatpush1.msra.mxu0 0.0
    %698 = vmatprep.subr.mxu0 0.0
    %699 = vmatpush1.msra.mxu0 0.0
    %700 = vmatprep.subr.mxu0 0.0
    %701 = vmatpush1.msra.mxu0 0.0
    %702 = vmatprep.subr.mxu0 0.0
    %703 = vmatpush1.msra.mxu0 0.0
    %704 = vmatprep.subr.mxu0 0.0
    %705 = vmatpush1.msra.mxu0 0.0
    %706 = vmatprep.subr.mxu0 0.0
    %707 = vmatpush1.msra.mxu0 0.0
    %708 = vmatprep.subr.mxu0 0.0
    %709 = vmatpush1.msra.mxu0 0.0
    %710 = vmatprep.subr.mxu0 0.0
    %711 = vmatpush1.msra.mxu0 0.0
    %712 = vmatprep.subr.mxu0 0.0
    %713 = vmatpush1.msra.mxu0 0.0
    %714 = vmatprep.subr.mxu0 0.0
    %715 = vmatpush1.msra.mxu0 0.0
    %716 = vmatprep.subr.mxu0 0.0
    %717 = vmatpush1.msra.mxu0 0.0
    %718 = vmatprep.subr.mxu0 0.0
    %719 = vmatpush1.msra.mxu0 0.0
    %720 = vmatprep.subr.mxu0 0.0
    %721 = vmatpush1.msra.mxu0 0.0
    %722 = vmatprep.subr.mxu0 0.0
    %723 = vmatpush1.msra.mxu0 0.0
    %724 = vmatprep.subr.mxu0 0.0
    %725 = vmatpush1.msra.mxu0 0.0
    %726 = vmatprep.subr.mxu0 0.0
    %727 = vmatpush1.msra.mxu0 0.0
    %728 = vmatprep.subr.mxu0 0.0
    %729 = vmatpush1.msra.mxu0 0.0
    %730 = vmatprep.subr.mxu0 0.0
    %731 = vmatpush1.msra.mxu0 0.0
    %732 = vmatprep.subr.mxu0 0.0
    %733 = vmatpush1.msra.mxu0 0.0
    %734 = vmatprep.subr.mxu0 0.0
    %735 = vmatpush1.msra.mxu0 0.0
    %736 = vmatprep.subr.mxu0 0.0
    %737 = vmatpush1.msra.mxu0 0.0
    %738 = vmatprep.subr.mxu0 0.0
    %739 = vmatpush1.msra.mxu0 0.0
    %740 = vmatprep.subr.mxu0 0.0
    %741 = vmatpush1.msra.mxu0 0.0
    %742 = vmatprep.subr.mxu0 0.0
    %743 = vmatpush1.msra.mxu0 0.0
    %744 = vmatprep.subr.mxu0 0.0
    %745 = vmatpush1.msra.mxu0 0.0
    %746 = vmatprep.subr.mxu0 0.0
    %747 = vmatpush1.msra.mxu0 0.0
    %748 = vmatprep.subr.mxu0 0.0
    %749 = vmatpush1.msra.mxu0 0.0
    %750 = vmatprep.subr.mxu0 0.0
    %751 = vmatpush1.msra.mxu0 0.0
    %752 = vmatprep.mubr.f32.mxu0 0.0
    %753 = vmatmul.mubr.f32.gmra.mrb[0].mxu0 %v683
    %v754 = vpop.f32.mrb[0].mxu0
    %v755 = vadd.f32 %v676, %v754
    %v756 = vpop.f32.mrb[0].mxu0
    %757 = vmatprep.mubr.f32.mxu0 0.0
    %758 = vmatmul.mubr.f32.gmra.mrb[0].mxu0 %v686
    %v759 = vpop.f32.mrb[0].mxu0
    %v760 = vadd.f32 %v676, %v759
    %v761 = vpop.f32.mrb[0].mxu0
    %762 = vdwg.mxu0
    %s763 = sld [smem:[#allocation2 + $0x2]]
    %vm764 = vcmp.ge.f32.partialorder %v755, 0.0
    %vm765 = vcmp.ge.f32.partialorder %v760, 0.0
    %v766 = vstv %s763
    %v767 = vmul.f32 %v766, %v755
    %v768 = vmul.f32 %v766, %v760
    %v769 = vsel %vm764, %v755, %v767
    %v770 = vsel %vm765, %v760, %v768
    %v771 = vadd.f32 %v769, %v770
    %v772 = vrot.slane %v771, 4
    %v773 = vadd.f32 %v771, %v772
    %v774 = vrot.slane %v773, 2
    %v775 = vadd.f32 %v773, %v774
    %v776 = vrot.slane %v775, 1
    %v777 = vadd.f32 %v775, %v776
    %v778 = vmul.f32 %v58, %v777
    %v779 = vsel %vm62, %v778, 0.0
    %780 = vadd.xlane.f32.xlu0 %v779
    %v781 = vpop.xlane.xlu0 %780
    %v782 = vmul.f32 %v781, 0.001953125
    %v783 = vmul.f32 %v782, %v58
    %v784 = vsel %vm62, %v783, 0.0
    %v785 = vrot.slane %v784, 4
    %v786 = vadd.f32 %v784, %v785
    %v787 = vrot.slane %v786, 2
    %v788 = vadd.f32 %v786, %v787
    %v789 = vrot.slane %v788, 1
    %v790 = vadd.f32 %v788, %v789
    %v791 = vsub.f32 %v769, %v790
    %v792 = vsub.f32 %v770, %v790
    %v793 = vmul.f32 %v791, %v791
    %v794 = vmul.f32 %v792, %v792
    %v795 = vadd.f32 %v793, %v794
    %v796 = vrot.slane %v795, 4
    %v797 = vadd.f32 %v795, %v796
    %v798 = vrot.slane %v797, 2
    %v799 = vadd.f32 %v797, %v798
    %v800 = vrot.slane %v799, 1
    %v801 = vadd.f32 %v799, %v800
    %v802 = vmul.f32 %v58, %v801
    %v803 = vsel %vm62, %v802, 0.0
    %804 = vadd.xlane.f32.xlu0 %v803
    %v805 = vpop.xlane.xlu0 %804
    %v806 = vmul.f32 %v805, 0.001953125
    %v807 = vadd.f32 %v806, 1e-08
    %v808 = vrsqrt.pop %v807
    %v809 = vmul.f32 %v808, %v58
    %v810 = vsel %vm62, %v809, 0.0
    %v811 = vrot.slane %v810, 4
    %v812 = vadd.f32 %v810, %v811
    %v813 = vrot.slane %v812, 2
    %v814 = vadd.f32 %v812, %v813
    %v815 = vrot.slane %v814, 1
    %v816 = vadd.f32 %v814, %v815
    %817 = vset.pattern.permute.xlu0 7
    %818 = vperm.xlu0 %817, %v220
    %v819 = vpop.permute.xlu0 %818
    %821 = vset.pattern.permute.xlu0 7
    %822 = vperm.xlu0 %821, %v221
    %v823 = vpop.permute.xlu0 %822
    %v825 = vmul.f32 %v816, %v819
    %v826 = vmul.f32 %v816, %v823
    %v827 = vmul.f32 %v791, %v825
    %v828 = vmul.f32 %v792, %v826
    %829 = vset.pattern.permute.xlu0 8
    %830 = vperm.xlu0 %829, %v220
    %v831 = vpop.permute.xlu0 %830
    %833 = vset.pattern.permute.xlu0 8
    %834 = vperm.xlu0 %833, %v221
    %v835 = vpop.permute.xlu0 %834
    %v837 = vadd.f32 %v827, %v831
    %v838 = vadd.f32 %v828, %v835
    %v839 = vld [vmem:[%s6] sm:$0xff]
    %v840 = vld [vmem:[%s6 + $0x8] sm:$0xff]
    %841 = vset.pattern.permute.xlu0 9
    %842 = vperm.xlu0 %841, %v220
    %v843 = vpop.permute.xlu0 %842
    %845 = vset.pattern.permute.xlu0 9
    %846 = vperm.xlu0 %845, %v221
    %v847 = vpop.permute.xlu0 %846
    %vm849 = vcmask 130048
    %v851 = vsel %vm849, %v839, 0
    %v854 = vsel %vm849, %v840, 0
    %856 = vmatprep.subr.mxu0 0.0
    %857 = vmatpush1.msra.mxu0 %v837
    %858 = vmatprep.subr.mxu0 0.0
    %859 = vmatpush1.msra.mxu0 %v838
    %860 = vmatprep.subr.mxu0 0.0
    %861 = vmatpush1.msra.mxu0 0.0
    %862 = vmatprep.subr.mxu0 0.0
    %863 = vmatpush1.msra.mxu0 0.0
    %864 = vmatprep.subr.mxu0 0.0
    %865 = vmatpush1.msra.mxu0 0.0
    %866 = vmatprep.subr.mxu0 0.0
    %867 = vmatpush1.msra.mxu0 0.0
    %868 = vmatprep.subr.mxu0 0.0
    %869 = vmatpush1.msra.mxu0 0.0
    %870 = vmatprep.subr.mxu0 0.0
    %871 = vmatpush1.msra.mxu0 0.0
    %872 = vmatprep.subr.mxu0 0.0
    %873 = vmatpush1.msra.mxu0 0.0
    %874 = vmatprep.subr.mxu0 0.0
    %875 = vmatpush1.msra.mxu0 0.0
    %876 = vmatprep.subr.mxu0 0.0
    %877 = vmatpush1.msra.mxu0 0.0
    %878 = vmatprep.subr.mxu0 0.0
    %879 = vmatpush1.msra.mxu0 0.0
    %880 = vmatprep.subr.mxu0 0.0
    %881 = vmatpush1.msra.mxu0 0.0
    %882 = vmatprep.subr.mxu0 0.0
    %883 = vmatpush1.msra.mxu0 0.0
    %884 = vmatprep.subr.mxu0 0.0
    %885 = vmatpush1.msra.mxu0 0.0
    %886 = vmatprep.subr.mxu0 0.0
    %887 = vmatpush1.msra.mxu0 0.0
    %888 = vmatprep.subr.mxu0 0.0
    %889 = vmatpush1.msra.mxu0 0.0
    %890 = vmatprep.subr.mxu0 0.0
    %891 = vmatpush1.msra.mxu0 0.0
    %892 = vmatprep.subr.mxu0 0.0
    %893 = vmatpush1.msra.mxu0 0.0
    %894 = vmatprep.subr.mxu0 0.0
    %895 = vmatpush1.msra.mxu0 0.0
    %896 = vmatprep.subr.mxu0 0.0
    %897 = vmatpush1.msra.mxu0 0.0
    %898 = vmatprep.subr.mxu0 0.0
    %899 = vmatpush1.msra.mxu0 0.0
    %900 = vmatprep.subr.mxu0 0.0
    %901 = vmatpush1.msra.mxu0 0.0
    %902 = vmatprep.subr.mxu0 0.0
    %903 = vmatpush1.msra.mxu0 0.0
    %904 = vmatprep.subr.mxu0 0.0
    %905 = vmatpush1.msra.mxu0 0.0
    %906 = vmatprep.subr.mxu0 0.0
    %907 = vmatpush1.msra.mxu0 0.0
    %908 = vmatprep.subr.mxu0 0.0
    %909 = vmatpush1.msra.mxu0 0.0
    %910 = vmatprep.subr.mxu0 0.0
    %911 = vmatpush1.msra.mxu0 0.0
    %912 = vmatprep.subr.mxu0 0.0
    %913 = vmatpush1.msra.mxu0 0.0
    %914 = vmatprep.subr.mxu0 0.0
    %915 = vmatpush1.msra.mxu0 0.0
    %916 = vmatprep.subr.mxu0 0.0
    %917 = vmatpush1.msra.mxu0 0.0
    %918 = vmatprep.subr.mxu0 0.0
    %919 = vmatpush1.msra.mxu0 0.0
    %920 = vmatprep.mubr.f32.mxu0 0.0
    %921 = vmatmul.mubr.f32.gmra.mrb[0].mxu0 %v851
    %v922 = vpop.f32.mrb[0].mxu0
    %v923 = vadd.f32 %v843, %v922
    %v924 = vpop.f32.mrb[0].mxu0
    %925 = vmatprep.mubr.f32.mxu0 0.0
    %926 = vmatmul.mubr.f32.gmra.mrb[0].mxu0 %v854
    %v927 = vpop.f32.mrb[0].mxu0
    %v928 = vadd.f32 %v847, %v927
    %v929 = vpop.f32.mrb[0].mxu0
    %930 = vdwg.mxu0
    %v931 = vadd.f32 %v217, %v923
    %v932 = vadd.f32 %v928, 0.0
    %s933 = scalar_lea.vmem %s7, 16
    %v934 = vld [vmem:[%s933] sm:$0xff]
    %v935 = vld [vmem:[%s933 + $0x8] sm:$0xff]
    %s936 = scalar_lea.vmem %s5, 16
    %v937 = vld [vmem:[%s936] sm:$0xff]
    %v938 = vld [vmem:[%s936 + $0x8] sm:$0xff]
    %940 = vset.pattern.permute.xlu0 3
    %941 = vperm.xlu0 %940, %v934
    %v942 = vpop.permute.xlu0 %941
    %945 = vset.pattern.permute.xlu0 3
    %946 = vperm.xlu0 %945, %v935
    %v947 = vpop.permute.xlu0 %946
    %v950 = vsel %vm146, %v937, 0
    %v953 = vsel %vm146, %v938, 0
    %955 = vmatprep.subr.mxu0 0.0
    %956 = vmatpush1.msra.mxu0 %v931
    %957 = vmatprep.subr.mxu0 0.0
    %958 = vmatpush1.msra.mxu0 0.0
    %959 = vmatprep.subr.mxu0 0.0
    %960 = vmatpush1.msra.mxu0 0.0
    %961 = vmatprep.subr.mxu0 0.0
    %962 = vmatpush1.msra.mxu0 0.0
    %963 = vmatprep.subr.mxu0 0.0
    %964 = vmatpush1.msra.mxu0 0.0
    %965 = vmatprep.subr.mxu0 0.0
    %966 = vmatpush1.msra.mxu0 0.0
    %967 = vmatprep.subr.mxu0 0.0
    %968 = vmatpush1.msra.mxu0 0.0
    %969 = vmatprep.subr.mxu0 0.0
    %970 = vmatpush1.msra.mxu0 0.0
    %971 = vmatprep.subr.mxu0 0.0
    %972 = vmatpush1.msra.mxu0 0.0
    %973 = vmatprep.subr.mxu0 0.0
    %974 = vmatpush1.msra.mxu0 0.0
    %975 = vmatprep.subr.mxu0 0.0
    %976 = vmatpush1.msra.mxu0 0.0
    %977 = vmatprep.subr.mxu0 0.0
    %978 = vmatpush1.msra.mxu0 0.0
    %979 = vmatprep.subr.mxu0 0.0
    %980 = vmatpush1.msra.mxu0 0.0
    %981 = vmatprep.subr.mxu0 0.0
    %982 = vmatpush1.msra.mxu0 0.0
    %983 = vmatprep.subr.mxu0 0.0
    %984 = vmatpush1.msra.mxu0 0.0
    %985 = vmatprep.subr.mxu0 0.0
    %986 = vmatpush1.msra.mxu0 0.0
    %987 = vmatprep.subr.mxu0 0.0
    %988 = vmatpush1.msra.mxu0 0.0
    %989 = vmatprep.subr.mxu0 0.0
    %990 = vmatpush1.msra.mxu0 0.0
    %991 = vmatprep.subr.mxu0 0.0
    %992 = vmatpush1.msra.mxu0 0.0
    %993 = vmatprep.subr.mxu0 0.0
    %994 = vmatpush1.msra.mxu0 0.0
    %995 = vmatprep.subr.mxu0 0.0
    %996 = vmatpush1.msra.mxu0 0.0
    %997 = vmatprep.subr.mxu0 0.0
    %998 = vmatpush1.msra.mxu0 0.0
    %999 = vmatprep.subr.mxu0 0.0
    %1000 = vmatpush1.msra.mxu0 0.0
    %1001 = vmatprep.subr.mxu0 0.0
    %1002 = vmatpush1.msra.mxu0 0.0
    %1003 = vmatprep.subr.mxu0 0.0
    %1004 = vmatpush1.msra.mxu0 0.0
    %1005 = vmatprep.subr.mxu0 0.0
    %1006 = vmatpush1.msra.mxu0 0.0
    %1007 = vmatprep.subr.mxu0 0.0
    %1008 = vmatpush1.msra.mxu0 0.0
    %1009 = vmatprep.subr.mxu0 0.0
    %1010 = vmatpush1.msra.mxu0 0.0
    %1011 = vmatprep.subr.mxu0 0.0
    %1012 = vmatpush1.msra.mxu0 0.0
    %1013 = vmatprep.subr.mxu0 0.0
    %1014 = vmatpush1.msra.mxu0 0.0
    %1015 = vmatprep.subr.mxu0 0.0
    %1016 = vmatpush1.msra.mxu0 0.0
    %1017 = vmatprep.subr.mxu0 0.0
    %1018 = vmatpush1.msra.mxu0 0.0
    %1019 = vmatprep.mubr.f32.mxu0 0.0
    %1020 = vmatmul.mubr.f32.gmra.mrb[0].mxu0 %v950
    %v1021 = vpop.f32.mrb[0].mxu0
    %v1022 = vadd.f32 %v942, %v1021
    %v1023 = vpop.f32.mrb[0].mxu0
    %1024 = vmatprep.mubr.f32.mxu0 0.0
    %1025 = vmatmul.mubr.f32.gmra.mrb[0].mxu0 %v953
    %v1026 = vpop.f32.mrb[0].mxu0
    %v1027 = vadd.f32 %v947, %v1026
    %v1028 = vpop.f32.mrb[0].mxu0
    %1029 = vdwg.mxu0
    %s1030 = sld [smem:[#allocation2 + $0x1]]
    %vm1031 = vcmp.ge.f32.partialorder %v1022, 0.0
    %vm1032 = vcmp.ge.f32.partialorder %v1027, 0.0
    %v1033 = vstv %s1030
    %v1034 = vmul.f32 %v1033, %v1022
    %v1035 = vmul.f32 %v1033, %v1027
    %v1036 = vsel %vm1031, %v1022, %v1034
    %v1037 = vsel %vm1032, %v1027, %v1035
    %v1038 = vadd.f32 %v1036, %v1037
    %v1039 = vrot.slane %v1038, 4
    %v1040 = vadd.f32 %v1038, %v1039
    %v1041 = vrot.slane %v1040, 2
    %v1042 = vadd.f32 %v1040, %v1041
    %v1043 = vrot.slane %v1042, 1
    %v1044 = vadd.f32 %v1042, %v1043
    %v1045 = vmul.f32 %v58, %v1044
    %v1046 = vsel %vm62, %v1045, 0.0
    %1047 = vadd.xlane.f32.xlu0 %v1046
    %v1048 = vpop.xlane.xlu0 %1047
    %v1049 = vmul.f32 %v1048, 0.001953125
    %v1050 = vmul.f32 %v1049, %v58
    %v1051 = vsel %vm62, %v1050, 0.0
    %v1052 = vrot.slane %v1051, 4
    %v1053 = vadd.f32 %v1051, %v1052
    %v1054 = vrot.slane %v1053, 2
    %v1055 = vadd.f32 %v1053, %v1054
    %v1056 = vrot.slane %v1055, 1
    %v1057 = vadd.f32 %v1055, %v1056
    %v1058 = vsub.f32 %v1036, %v1057
    %v1059 = vsub.f32 %v1037, %v1057
    %v1060 = vmul.f32 %v1058, %v1058
    %v1061 = vmul.f32 %v1059, %v1059
    %v1062 = vadd.f32 %v1060, %v1061
    %v1063 = vrot.slane %v1062, 4
    %v1064 = vadd.f32 %v1062, %v1063
    %v1065 = vrot.slane %v1064, 2
    %v1066 = vadd.f32 %v1064, %v1065
    %v1067 = vrot.slane %v1066, 1
    %v1068 = vadd.f32 %v1066, %v1067
    %v1069 = vmul.f32 %v58, %v1068
    %v1070 = vsel %vm62, %v1069, 0.0
    %1071 = vadd.xlane.f32.xlu0 %v1070
    %v1072 = vpop.xlane.xlu0 %1071
    %v1073 = vmul.f32 %v1072, 0.001953125
    %v1074 = vadd.f32 %v1073, 1e-08
    %v1075 = vrsqrt.pop %v1074
    %v1076 = vmul.f32 %v1075, %v58
    %v1077 = vsel %vm62, %v1076, 0.0
    %v1078 = vrot.slane %v1077, 4
    %v1079 = vadd.f32 %v1077, %v1078
    %v1080 = vrot.slane %v1079, 2
    %v1081 = vadd.f32 %v1079, %v1080
    %v1082 = vrot.slane %v1081, 1
    %v1083 = vadd.f32 %v1081, %v1082
    %1084 = vset.pattern.permute.xlu0 4
    %1085 = vperm.xlu0 %1084, %v934
    %v1086 = vpop.permute.xlu0 %1085
    %1088 = vset.pattern.permute.xlu0 4
    %1089 = vperm.xlu0 %1088, %v935
    %v1090 = vpop.permute.xlu0 %1089
    %v1092 = vmul.f32 %v1083, %v1086
    %v1093 = vmul.f32 %v1083, %v1090
    %v1094 = vmul.f32 %v1058, %v1092
    %v1095 = vmul.f32 %v1059, %v1093
    %1096 = vset.pattern.permute.xlu0 5
    %1097 = vperm.xlu0 %1096, %v934
    %v1098 = vpop.permute.xlu0 %1097
    %1100 = vset.pattern.permute.xlu0 5
    %1101 = vperm.xlu0 %1100, %v935
    %v1102 = vpop.permute.xlu0 %1101
    %v1104 = vadd.f32 %v1094, %v1098
    %v1105 = vadd.f32 %v1095, %v1102
    %vm1106 = vcmp.ge.f32.partialorder %v71, 2.0
    %v1107 = vsel %vm1106, 1, 0
    %v1108 = vcvt.s32.f32 %v1107
    %vm1109 = vcmp.le.f32.partialorder %v71, 29.0
    %v1110 = vsel %vm1109, 1, 0
    %v1111 = vcvt.s32.f32 %v1110
    %1112 = vrot.lane.b32.xlu0 %v1104, 2
    %v1113 = vpop.permute.xlu0 %1112
    %1114 = vrot.lane.b32.xlu0 %v1105, 2
    %v1115 = vpop.permute.xlu0 %1114
    %v1116 = vmul.f32 %v1108, %v1113
    %v1117 = vmul.f32 %v1108, %v1115
    %1118 = vset.pattern.permute.xlu0 0
    %1119 = vperm.xlu0 %1118, %v934
    %v1120 = vpop.permute.xlu0 %1119
    %1122 = vset.pattern.permute.xlu0 0
    %1123 = vperm.xlu0 %1122, %v935
    %v1124 = vpop.permute.xlu0 %1123
    %v1126 = vmul.f32 %v1120, %v1116
    %v1127 = vmul.f32 %v1124, %v1117
    %1128 = vset.pattern.permute.xlu0 1
    %1129 = vperm.xlu0 %1128, %v934
    %v1130 = vpop.permute.xlu0 %1129
    %1132 = vset.pattern.permute.xlu0 1
    %1133 = vperm.xlu0 %1132, %v935
    %v1134 = vpop.permute.xlu0 %1133
    %v1136 = vmul.f32 %v1130, %v1104
    %v1137 = vmul.f32 %v1134, %v1105
    %v1138 = vadd.f32 %v1126, %v1136
    %v1139 = vadd.f32 %v1127, %v1137
    %1140 = vrot.lane.b32.xlu0 %v1104, 126
    %v1141 = vpop.permute.xlu0 %1140
    %1142 = vrot.lane.b32.xlu0 %v1105, 126
    %v1143 = vpop.permute.xlu0 %1142
    %v1144 = vmul.f32 %v1111, %v1141
    %v1145 = vmul.f32 %v1111, %v1143
    %1146 = vset.pattern.permute.xlu0 2
    %1147 = vperm.xlu0 %1146, %v934
    %v1148 = vpop.permute.xlu0 %1147
    %1150 = vset.pattern.permute.xlu0 2
    %1151 = vperm.xlu0 %1150, %v935
    %v1152 = vpop.permute.xlu0 %1151
    %v1154 = vmul.f32 %v1148, %v1144
    %v1155 = vmul.f32 %v1152, %v1145
    %v1156 = vadd.f32 %v1138, %v1154
    %v1157 = vadd.f32 %v1139, %v1155
    %1158 = vset.pattern.permute.xlu0 6
    %1159 = vperm.xlu0 %1158, %v934
    %v1160 = vpop.permute.xlu0 %1159
    %1162 = vset.pattern.permute.xlu0 6
    %1163 = vperm.xlu0 %1162, %v935
    %v1164 = vpop.permute.xlu0 %1163
    %v1166 = vadd.f32 %v1156, %v1160
    %v1167 = vadd.f32 %v1157, %v1164
    %v1168 = vrot.slane %v1166, 7
    %v1169 = vrot.slane %v1167, 7
    %v1170 = vsel %vm455, %v1168, %v1169
    %v1171 = vsel %vm455, %v1169, %v1168
    %v1172 = vmul.f32 %v77, %v1171
    %v1173 = vmul.f32 %v78, %v1170
    %v1174 = vrot.slane %v1166, 1
    %v1175 = vrot.slane %v1167, 1
    %v1176 = vsel %vm462, %v1174, %v1175
    %v1177 = vsel %vm462, %v1175, %v1174
    %v1178 = vmul.f32 %v83, %v1176
    %v1179 = vmul.f32 %v84, %v1177
    %s1180 = scalar_lea.vmem %s8, 384
    %v1181 = vld [vmem:[%s1180] sm:$0xff]
    %v1182 = vld [vmem:[%s1180 + $0x8] sm:$0xff]
    %v1183 = vld [vmem:[%s1180 + $0x10] sm:$0xff]
    %v1184 = vld [vmem:[%s1180 + $0x18] sm:$0xff]
    %v1185 = vld [vmem:[%s1180 + $0x20] sm:$0xff]
    %v1186 = vld [vmem:[%s1180 + $0x28] sm:$0xff]
    %v1187 = vld [vmem:[%s1180 + $0x30] sm:$0xff]
    %v1188 = vld [vmem:[%s1180 + $0x38] sm:$0xff]
    %v1189 = vld [vmem:[%s1180 + $0x40] sm:$0xff]
    %v1190 = vld [vmem:[%s1180 + $0x48] sm:$0xff]
    %v1191 = vld [vmem:[%s1180 + $0x50] sm:$0xff]
    %v1192 = vld [vmem:[%s1180 + $0x58] sm:$0xff]
    %v1193 = vld [vmem:[%s1180 + $0x60] sm:$0xff]
    %v1194 = vld [vmem:[%s1180 + $0x68] sm:$0xff]
    %v1195 = vld [vmem:[%s1180 + $0x70] sm:$0xff]
    %v1196 = vld [vmem:[%s1180 + $0x78] sm:$0xff]
    %v1197 = vld [vmem:[%s1180 + $0x80] sm:$0xff]
    %v1198 = vld [vmem:[%s1180 + $0x88] sm:$0xff]
    %v1199 = vld [vmem:[%s1180 + $0x90] sm:$0xff]
    %v1200 = vld [vmem:[%s1180 + $0x98] sm:$0xff]
    %v1201 = vld [vmem:[%s1180 + $0xa0] sm:$0xff]
    %v1202 = vld [vmem:[%s1180 + $0xa8] sm:$0xff]
    %v1203 = vld [vmem:[%s1180 + $0xb0] sm:$0xff]
    %v1204 = vld [vmem:[%s1180 + $0xb8] sm:$0xff]
    %v1205 = vld [vmem:[%s1180 + $0xc0] sm:$0xff]
    %v1206 = vld [vmem:[%s1180 + $0xc8] sm:$0xff]
    %v1207 = vld [vmem:[%s1180 + $0xd0] sm:$0xff]
    %v1208 = vld [vmem:[%s1180 + $0xd8] sm:$0xff]
    %v1209 = vld [vmem:[%s1180 + $0xe0] sm:$0xff]
    %v1210 = vld [vmem:[%s1180 + $0xe8] sm:$0xff]
    %v1211 = vld [vmem:[%s1180 + $0xf0] sm:$0xff]
    %v1212 = vld [vmem:[%s1180 + $0xf8] sm:$0xff]
    %v1213 = vld [vmem:[%s1180 + $0x100] sm:$0xff]
    %v1214 = vld [vmem:[%s1180 + $0x108] sm:$0xff]
    %v1215 = vld [vmem:[%s1180 + $0x110] sm:$0xff]
    %v1216 = vld [vmem:[%s1180 + $0x118] sm:$0xff]
    %v1217 = vld [vmem:[%s1180 + $0x120] sm:$0xff]
    %v1218 = vld [vmem:[%s1180 + $0x128] sm:$0xff]
    %v1219 = vld [vmem:[%s1180 + $0x130] sm:$0xff]
    %v1220 = vld [vmem:[%s1180 + $0x138] sm:$0xff]
    %v1221 = vld [vmem:[%s1180 + $0x140] sm:$0xff]
    %v1222 = vld [vmem:[%s1180 + $0x148] sm:$0xff]
    %v1223 = vld [vmem:[%s1180 + $0x150] sm:$0xff]
    %v1224 = vld [vmem:[%s1180 + $0x158] sm:$0xff]
    %v1225 = vld [vmem:[%s1180 + $0x160] sm:$0xff]
    %v1226 = vld [vmem:[%s1180 + $0x168] sm:$0xff]
    %v1227 = vld [vmem:[%s1180 + $0x170] sm:$0xff]
    %v1228 = vld [vmem:[%s1180 + $0x178] sm:$0xff]
    %1229 = vmatprep.subr.mxu0 0.0
    %1230 = vmatpush1.msra.mxu0 %v1181
    %1231 = vmatprep.subr.mxu0 0.0
    %1232 = vmatpush1.msra.mxu0 %v1182
    %1233 = vmatprep.subr.mxu0 0.0
    %1234 = vmatpush1.msra.mxu0 %v1183
    %1235 = vmatprep.subr.mxu0 0.0
    %1236 = vmatpush1.msra.mxu0 %v1184
    %1237 = vmatprep.subr.mxu0 0.0
    %1238 = vmatpush1.msra.mxu0 %v1185
    %1239 = vmatprep.subr.mxu0 0.0
    %1240 = vmatpush1.msra.mxu0 %v1186
    %1241 = vmatprep.subr.mxu0 0.0
    %1242 = vmatpush1.msra.mxu0 %v1187
    %1243 = vmatprep.subr.mxu0 0.0
    %1244 = vmatpush1.msra.mxu0 %v1188
    %1245 = vmatprep.subr.mxu0 0.0
    %1246 = vmatpush1.msra.mxu0 %v1189
    %1247 = vmatprep.subr.mxu0 0.0
    %1248 = vmatpush1.msra.mxu0 %v1190
    %1249 = vmatprep.subr.mxu0 0.0
    %1250 = vmatpush1.msra.mxu0 %v1191
    %1251 = vmatprep.subr.mxu0 0.0
    %1252 = vmatpush1.msra.mxu0 %v1192
    %1253 = vmatprep.subr.mxu0 0.0
    %1254 = vmatpush1.msra.mxu0 %v1193
    %1255 = vmatprep.subr.mxu0 0.0
    %1256 = vmatpush1.msra.mxu0 %v1194
    %1257 = vmatprep.subr.mxu0 0.0
    %1258 = vmatpush1.msra.mxu0 %v1195
    %1259 = vmatprep.subr.mxu0 0.0
    %1260 = vmatpush1.msra.mxu0 %v1196
    %1261 = vmatprep.subr.mxu0 0.0
    %1262 = vmatpush1.msra.mxu0 %v1197
    %1263 = vmatprep.subr.mxu0 0.0
    %1264 = vmatpush1.msra.mxu0 %v1198
    %1265 = vmatprep.subr.mxu0 0.0
    %1266 = vmatpush1.msra.mxu0 %v1199
    %1267 = vmatprep.subr.mxu0 0.0
    %1268 = vmatpush1.msra.mxu0 %v1200
    %1269 = vmatprep.subr.mxu0 0.0
    %1270 = vmatpush1.msra.mxu0 %v1201
    %1271 = vmatprep.subr.mxu0 0.0
    %1272 = vmatpush1.msra.mxu0 %v1202
    %1273 = vmatprep.subr.mxu0 0.0
    %1274 = vmatpush1.msra.mxu0 %v1203
    %1275 = vmatprep.subr.mxu0 0.0
    %1276 = vmatpush1.msra.mxu0 %v1204
    %1277 = vmatprep.subr.mxu0 0.0
    %1278 = vmatpush1.msra.mxu0 %v1205
    %1279 = vmatprep.subr.mxu0 0.0
    %1280 = vmatpush1.msra.mxu0 %v1206
    %1281 = vmatprep.subr.mxu0 0.0
    %1282 = vmatpush1.msra.mxu0 %v1207
    %1283 = vmatprep.subr.mxu0 0.0
    %1284 = vmatpush1.msra.mxu0 %v1208
    %1285 = vmatprep.subr.mxu0 0.0
    %1286 = vmatpush1.msra.mxu0 %v1209
    %1287 = vmatprep.subr.mxu0 0.0
    %1288 = vmatpush1.msra.mxu0 %v1210
    %1289 = vmatprep.subr.mxu0 0.0
    %1290 = vmatpush1.msra.mxu0 %v1211
    %1291 = vmatprep.subr.mxu0 0.0
    %1292 = vmatpush1.msra.mxu0 %v1212
    %1293 = vmatprep.mubr.f32.mxu0 %v1166
    %1294 = vmatmul.mubr.f32.gmra.mrb[0].mxu0 %v1172
    %v1295 = vpop.f32.mrb[0].mxu0
    %v1296 = vadd.f32 0.0, %v1295
    %v1297 = vpop.f32.mrb[0].mxu0
    %1298 = vmatprep.mubr.f32.mxu0 %v1167
    %1299 = vmatmul.mubr.f32.gmra.mrb[0].mxu0 %v1173
    %v1300 = vpop.f32.mrb[0].mxu0
    %v1301 = vadd.f32 0.0, %v1300
    %v1302 = vpop.f32.mrb[0].mxu0
    %1303 = vdwg.mxu0
    %1304 = vmatprep.subr.mxu0 0.0
    %1305 = vmatpush1.msra.mxu0 %v1213
    %1306 = vmatprep.subr.mxu0 0.0
    %1307 = vmatpush1.msra.mxu0 %v1214
    %1308 = vmatprep.subr.mxu0 0.0
    %1309 = vmatpush1.msra.mxu0 %v1215
    %1310 = vmatprep.subr.mxu0 0.0
    %1311 = vmatpush1.msra.mxu0 %v1216
    %1312 = vmatprep.subr.mxu0 0.0
    %1313 = vmatpush1.msra.mxu0 %v1217
    %1314 = vmatprep.subr.mxu0 0.0
    %1315 = vmatpush1.msra.mxu0 %v1218
    %1316 = vmatprep.subr.mxu0 0.0
    %1317 = vmatpush1.msra.mxu0 %v1219
    %1318 = vmatprep.subr.mxu0 0.0
    %1319 = vmatpush1.msra.mxu0 %v1220
    %1320 = vmatprep.subr.mxu0 0.0
    %1321 = vmatpush1.msra.mxu0 %v1221
    %1322 = vmatprep.subr.mxu0 0.0
    %1323 = vmatpush1.msra.mxu0 %v1222
    %1324 = vmatprep.subr.mxu0 0.0
    %1325 = vmatpush1.msra.mxu0 %v1223
    %1326 = vmatprep.subr.mxu0 0.0
    %1327 = vmatpush1.msra.mxu0 %v1224
    %1328 = vmatprep.subr.mxu0 0.0
    %1329 = vmatpush1.msra.mxu0 %v1225
    %1330 = vmatprep.subr.mxu0 0.0
    %1331 = vmatpush1.msra.mxu0 %v1226
    %1332 = vmatprep.subr.mxu0 0.0
    %1333 = vmatpush1.msra.mxu0 %v1227
    %1334 = vmatprep.subr.mxu0 0.0
    %1335 = vmatpush1.msra.mxu0 %v1228
    %1336 = vmatprep.subr.mxu0 0.0
    %1337 = vmatpush1.msra.mxu0 0.0
    %1338 = vmatprep.subr.mxu0 0.0
    %1339 = vmatpush1.msra.mxu0 0.0
    %1340 = vmatprep.subr.mxu0 0.0
    %1341 = vmatpush1.msra.mxu0 0.0
    %1342 = vmatprep.subr.mxu0 0.0
    %1343 = vmatpush1.msra.mxu0 0.0
    %1344 = vmatprep.subr.mxu0 0.0
    %1345 = vmatpush1.msra.mxu0 0.0
    %1346 = vmatprep.subr.mxu0 0.0
    %1347 = vmatpush1.msra.mxu0 0.0
    %1348 = vmatprep.subr.mxu0 0.0
    %1349 = vmatpush1.msra.mxu0 0.0
    %1350 = vmatprep.subr.mxu0 0.0
    %1351 = vmatpush1.msra.mxu0 0.0
    %1352 = vmatprep.subr.mxu0 0.0
    %1353 = vmatpush1.msra.mxu0 0.0
    %1354 = vmatprep.subr.mxu0 0.0
    %1355 = vmatpush1.msra.mxu0 0.0
    %1356 = vmatprep.subr.mxu0 0.0
    %1357 = vmatpush1.msra.mxu0 0.0
    %1358 = vmatprep.subr.mxu0 0.0
    %1359 = vmatpush1.msra.mxu0 0.0
    %1360 = vmatprep.subr.mxu0 0.0
    %1361 = vmatpush1.msra.mxu0 0.0
    %1362 = vmatprep.subr.mxu0 0.0
    %1363 = vmatpush1.msra.mxu0 0.0
    %1364 = vmatprep.subr.mxu0 0.0
    %1365 = vmatpush1.msra.mxu0 0.0
    %1366 = vmatprep.subr.mxu0 0.0
    %1367 = vmatpush1.msra.mxu0 0.0
    %1368 = vmatprep.mubr.f32.mxu0 0.0
    %1369 = vmatmul.mubr.f32.gmra.mrb[0].mxu0 %v1178
    %v1370 = vpop.f32.mrb[0].mxu0
    %v1371 = vadd.f32 %v1296, %v1370
    %v1372 = vpop.f32.mrb[0].mxu0
    %1373 = vmatprep.mubr.f32.mxu0 0.0
    %1374 = vmatmul.mubr.f32.gmra.mrb[0].mxu0 %v1179
    %v1375 = vpop.f32.mrb[0].mxu0
    %v1376 = vadd.f32 %v1301, %v1375
    %v1377 = vpop.f32.mrb[0].mxu0
    %1378 = vdwg.mxu0
    %1379 = vset.pattern.permute.xlu0 10
    %1380 = vperm.xlu0 %1379, %v934
    %v1381 = vpop.permute.xlu0 %1380
    %v1383 = vmul.f32 %v1381, %v58
    %v1384 = vsel %vm62, %v1383, 0.0
    %v1385 = vrot.slane %v1384, 4
    %v1386 = vadd.f32 %v1384, %v1385
    %v1387 = vrot.slane %v1386, 2
    %v1388 = vadd.f32 %v1386, %v1387
    %v1389 = vrot.slane %v1388, 1
    %v1390 = vadd.f32 %v1388, %v1389
    %s1391 = scalar_lea.vmem %s9, 32
    %v1392 = vld [vmem:[%s1391] sm:$0xff]
    %v1393 = vld [vmem:[%s1391 + $0x8] sm:$0xff]
    %v1394 = vld [vmem:[%s1391 + $0x10] sm:$0xff]
    %v1395 = vld [vmem:[%s1391 + $0x18] sm:$0xff]
    %v1397 = vsel %vm681, %v1371, 0
    %v1400 = vsel %vm681, %v1376, 0
    %1402 = vmatprep.subr.mxu0 0.0
    %1403 = vmatpush1.msra.mxu0 %v1392
    %1404 = vmatprep.subr.mxu0 0.0
    %1405 = vmatpush1.msra.mxu0 %v1393
    %1406 = vmatprep.subr.mxu0 0.0
    %1407 = vmatpush1.msra.mxu0 %v1394
    %1408 = vmatprep.subr.mxu0 0.0
    %1409 = vmatpush1.msra.mxu0 %v1395
    %1410 = vmatprep.subr.mxu0 0.0
    %1411 = vmatpush1.msra.mxu0 0.0
    %1412 = vmatprep.subr.mxu0 0.0
    %1413 = vmatpush1.msra.mxu0 0.0
    %1414 = vmatprep.subr.mxu0 0.0
    %1415 = vmatpush1.msra.mxu0 0.0
    %1416 = vmatprep.subr.mxu0 0.0
    %1417 = vmatpush1.msra.mxu0 0.0
    %1418 = vmatprep.subr.mxu0 0.0
    %1419 = vmatpush1.msra.mxu0 0.0
    %1420 = vmatprep.subr.mxu0 0.0
    %1421 = vmatpush1.msra.mxu0 0.0
    %1422 = vmatprep.subr.mxu0 0.0
    %1423 = vmatpush1.msra.mxu0 0.0
    %1424 = vmatprep.subr.mxu0 0.0
    %1425 = vmatpush1.msra.mxu0 0.0
    %1426 = vmatprep.subr.mxu0 0.0
    %1427 = vmatpush1.msra.mxu0 0.0
    %1428 = vmatprep.subr.mxu0 0.0
    %1429 = vmatpush1.msra.mxu0 0.0
    %1430 = vmatprep.subr.mxu0 0.0
    %1431 = vmatpush1.msra.mxu0 0.0
    %1432 = vmatprep.subr.mxu0 0.0
    %1433 = vmatpush1.msra.mxu0 0.0
    %1434 = vmatprep.subr.mxu0 0.0
    %1435 = vmatpush1.msra.mxu0 0.0
    %1436 = vmatprep.subr.mxu0 0.0
    %1437 = vmatpush1.msra.mxu0 0.0
    %1438 = vmatprep.subr.mxu0 0.0
    %1439 = vmatpush1.msra.mxu0 0.0
    %1440 = vmatprep.subr.mxu0 0.0
    %1441 = vmatpush1.msra.mxu0 0.0
    %1442 = vmatprep.subr.mxu0 0.0
    %1443 = vmatpush1.msra.mxu0 0.0
    %1444 = vmatprep.subr.mxu0 0.0
    %1445 = vmatpush1.msra.mxu0 0.0
    %1446 = vmatprep.subr.mxu0 0.0
    %1447 = vmatpush1.msra.mxu0 0.0
    %1448 = vmatprep.subr.mxu0 0.0
    %1449 = vmatpush1.msra.mxu0 0.0
    %1450 = vmatprep.subr.mxu0 0.0
    %1451 = vmatpush1.msra.mxu0 0.0
    %1452 = vmatprep.subr.mxu0 0.0
    %1453 = vmatpush1.msra.mxu0 0.0
    %1454 = vmatprep.subr.mxu0 0.0
    %1455 = vmatpush1.msra.mxu0 0.0
    %1456 = vmatprep.subr.mxu0 0.0
    %1457 = vmatpush1.msra.mxu0 0.0
    %1458 = vmatprep.subr.mxu0 0.0
    %1459 = vmatpush1.msra.mxu0 0.0
    %1460 = vmatprep.subr.mxu0 0.0
    %1461 = vmatpush1.msra.mxu0 0.0
    %1462 = vmatprep.subr.mxu0 0.0
    %1463 = vmatpush1.msra.mxu0 0.0
    %1464 = vmatprep.subr.mxu0 0.0
    %1465 = vmatpush1.msra.mxu0 0.0
    %1466 = vmatprep.mubr.f32.mxu0 0.0
    %1467 = vmatmul.mubr.f32.gmra.mrb[0].mxu0 %v1397
    %v1468 = vpop.f32.mrb[0].mxu0
    %v1469 = vadd.f32 %v1390, %v1468
    %v1470 = vpop.f32.mrb[0].mxu0
    %1471 = vmatprep.mubr.f32.mxu0 0.0
    %1472 = vmatmul.mubr.f32.gmra.mrb[0].mxu0 %v1400
    %v1473 = vpop.f32.mrb[0].mxu0
    %v1474 = vadd.f32 %v1390, %v1473
    %v1475 = vpop.f32.mrb[0].mxu0
    %1476 = vdwg.mxu0
    %s1477 = sld [smem:[#allocation2 + $0x3]]
    %vm1478 = vcmp.ge.f32.partialorder %v1469, 0.0
    %vm1479 = vcmp.ge.f32.partialorder %v1474, 0.0
    %v1480 = vstv %s1477
    %v1481 = vmul.f32 %v1480, %v1469
    %v1482 = vmul.f32 %v1480, %v1474
    %v1483 = vsel %vm1478, %v1469, %v1481
    %v1484 = vsel %vm1479, %v1474, %v1482
    %v1485 = vadd.f32 %v1483, %v1484
    %v1486 = vrot.slane %v1485, 4
    %v1487 = vadd.f32 %v1485, %v1486
    %v1488 = vrot.slane %v1487, 2
    %v1489 = vadd.f32 %v1487, %v1488
    %v1490 = vrot.slane %v1489, 1
    %v1491 = vadd.f32 %v1489, %v1490
    %v1492 = vmul.f32 %v58, %v1491
    %v1493 = vsel %vm62, %v1492, 0.0
    %1494 = vadd.xlane.f32.xlu0 %v1493
    %v1495 = vpop.xlane.xlu0 %1494
    %v1496 = vmul.f32 %v1495, 0.001953125
    %v1497 = vmul.f32 %v1496, %v58
    %v1498 = vsel %vm62, %v1497, 0.0
    %v1499 = vrot.slane %v1498, 4
    %v1500 = vadd.f32 %v1498, %v1499
    %v1501 = vrot.slane %v1500, 2
    %v1502 = vadd.f32 %v1500, %v1501
    %v1503 = vrot.slane %v1502, 1
    %v1504 = vadd.f32 %v1502, %v1503
    %v1505 = vsub.f32 %v1483, %v1504
    %v1506 = vsub.f32 %v1484, %v1504
    %v1507 = vmul.f32 %v1505, %v1505
    %v1508 = vmul.f32 %v1506, %v1506
    %v1509 = vadd.f32 %v1507, %v1508
    %v1510 = vrot.slane %v1509, 4
    %v1511 = vadd.f32 %v1509, %v1510
    %v1512 = vrot.slane %v1511, 2
    %v1513 = vadd.f32 %v1511, %v1512
    %v1514 = vrot.slane %v1513, 1
    %v1515 = vadd.f32 %v1513, %v1514
    %v1516 = vmul.f32 %v58, %v1515
    %v1517 = vsel %vm62, %v1516, 0.0
    %1518 = vadd.xlane.f32.xlu0 %v1517
    %v1519 = vpop.xlane.xlu0 %1518
    %v1520 = vmul.f32 %v1519, 0.001953125
    %v1521 = vadd.f32 %v1520, 1e-08
    %v1522 = vrsqrt.pop %v1521
    %v1523 = vmul.f32 %v1522, %v58
    %v1524 = vsel %vm62, %v1523, 0.0
    %v1525 = vrot.slane %v1524, 4
    %v1526 = vadd.f32 %v1524, %v1525
    %v1527 = vrot.slane %v1526, 2
    %v1528 = vadd.f32 %v1526, %v1527
    %v1529 = vrot.slane %v1528, 1
    %v1530 = vadd.f32 %v1528, %v1529
    %1531 = vset.pattern.permute.xlu0 7
    %1532 = vperm.xlu0 %1531, %v934
    %v1533 = vpop.permute.xlu0 %1532
    %1535 = vset.pattern.permute.xlu0 7
    %1536 = vperm.xlu0 %1535, %v935
    %v1537 = vpop.permute.xlu0 %1536
    %v1539 = vmul.f32 %v1530, %v1533
    %v1540 = vmul.f32 %v1530, %v1537
    %v1541 = vmul.f32 %v1505, %v1539
    %v1542 = vmul.f32 %v1506, %v1540
    %1543 = vset.pattern.permute.xlu0 8
    %1544 = vperm.xlu0 %1543, %v934
    %v1545 = vpop.permute.xlu0 %1544
    %1547 = vset.pattern.permute.xlu0 8
    %1548 = vperm.xlu0 %1547, %v935
    %v1549 = vpop.permute.xlu0 %1548
    %v1551 = vadd.f32 %v1541, %v1545
    %v1552 = vadd.f32 %v1542, %v1549
    %s1553 = scalar_lea.vmem %s6, 16
    %v1554 = vld [vmem:[%s1553] sm:$0xff]
    %v1555 = vld [vmem:[%s1553 + $0x8] sm:$0xff]
    %1556 = vset.pattern.permute.xlu0 9
    %1557 = vperm.xlu0 %1556, %v934
    %v1558 = vpop.permute.xlu0 %1557
    %1559 = vset.pattern.permute.xlu0 9
    %1560 = vperm.xlu0 %1559, %v935
    %v1561 = vpop.permute.xlu0 %1560
    %v1564 = vsel %vm849, %v1554, 0
    %v1567 = vsel %vm849, %v1555, 0
    %1569 = vmatprep.subr.mxu0 0.0
    %1570 = vmatpush1.msra.mxu0 %v1551
    %1571 = vmatprep.subr.mxu0 0.0
    %1572 = vmatpush1.msra.mxu0 %v1552
    %1573 = vmatprep.subr.mxu0 0.0
    %1574 = vmatpush1.msra.mxu0 0.0
    %1575 = vmatprep.subr.mxu0 0.0
    %1576 = vmatpush1.msra.mxu0 0.0
    %1577 = vmatprep.subr.mxu0 0.0
    %1578 = vmatpush1.msra.mxu0 0.0
    %1579 = vmatprep.subr.mxu0 0.0
    %1580 = vmatpush1.msra.mxu0 0.0
    %1581 = vmatprep.subr.mxu0 0.0
    %1582 = vmatpush1.msra.mxu0 0.0
    %1583 = vmatprep.subr.mxu0 0.0
    %1584 = vmatpush1.msra.mxu0 0.0
    %1585 = vmatprep.subr.mxu0 0.0
    %1586 = vmatpush1.msra.mxu0 0.0
    %1587 = vmatprep.subr.mxu0 0.0
    %1588 = vmatpush1.msra.mxu0 0.0
    %1589 = vmatprep.subr.mxu0 0.0
    %1590 = vmatpush1.msra.mxu0 0.0
    %1591 = vmatprep.subr.mxu0 0.0
    %1592 = vmatpush1.msra.mxu0 0.0
    %1593 = vmatprep.subr.mxu0 0.0
    %1594 = vmatpush1.msra.mxu0 0.0
    %1595 = vmatprep.subr.mxu0 0.0
    %1596 = vmatpush1.msra.mxu0 0.0
    %1597 = vmatprep.subr.mxu0 0.0
    %1598 = vmatpush1.msra.mxu0 0.0
    %1599 = vmatprep.subr.mxu0 0.0
    %1600 = vmatpush1.msra.mxu0 0.0
    %1601 = vmatprep.subr.mxu0 0.0
    %1602 = vmatpush1.msra.mxu0 0.0
    %1603 = vmatprep.subr.mxu0 0.0
    %1604 = vmatpush1.msra.mxu0 0.0
    %1605 = vmatprep.subr.mxu0 0.0
    %1606 = vmatpush1.msra.mxu0 0.0
    %1607 = vmatprep.subr.mxu0 0.0
    %1608 = vmatpush1.msra.mxu0 0.0
    %1609 = vmatprep.subr.mxu0 0.0
    %1610 = vmatpush1.msra.mxu0 0.0
    %1611 = vmatprep.subr.mxu0 0.0
    %1612 = vmatpush1.msra.mxu0 0.0
    %1613 = vmatprep.subr.mxu0 0.0
    %1614 = vmatpush1.msra.mxu0 0.0
    %1615 = vmatprep.subr.mxu0 0.0
    %1616 = vmatpush1.msra.mxu0 0.0
    %1617 = vmatprep.subr.mxu0 0.0
    %1618 = vmatpush1.msra.mxu0 0.0
    %1619 = vmatprep.subr.mxu0 0.0
    %1620 = vmatpush1.msra.mxu0 0.0
    %1621 = vmatprep.subr.mxu0 0.0
    %1622 = vmatpush1.msra.mxu0 0.0
    %1623 = vmatprep.subr.mxu0 0.0
    %1624 = vmatpush1.msra.mxu0 0.0
    %1625 = vmatprep.subr.mxu0 0.0
    %1626 = vmatpush1.msra.mxu0 0.0
    %1627 = vmatprep.subr.mxu0 0.0
    %1628 = vmatpush1.msra.mxu0 0.0
    %1629 = vmatprep.subr.mxu0 0.0
    %1630 = vmatpush1.msra.mxu0 0.0
    %1631 = vmatprep.subr.mxu0 0.0
    %1632 = vmatpush1.msra.mxu0 0.0
    %1633 = vmatprep.mubr.f32.mxu0 0.0
    %1634 = vmatmul.mubr.f32.gmra.mrb[0].mxu0 %v1564
    %v1635 = vpop.f32.mrb[0].mxu0
    %v1636 = vpop.f32.mrb[0].mxu0
    %1637 = vmatprep.mubr.f32.mxu0 0.0
    %1638 = vmatmul.mubr.f32.gmra.mrb[0].mxu0 %v1567
    %v1639 = vpop.f32.mrb[0].mxu0
    %v1640 = vadd.f32 %v1561, %v1639
    %v1641 = vpop.f32.mrb[0].mxu0
    %1642 = vdwg.mxu0
    %v1643 = vadd.f32 %v932, %v1640
    %v1644 = vld [vmem:[%s4] sm:$0xff]
    %s1645 = sld [smem:[#allocation2 + $0x4]]
    %vm1646 = vcmp.ge.f32.partialorder %v1643, 0.0
    %v1647 = vstv %s1645
    %v1648 = vmul.f32 %v1647, %v1643
    %v1649 = vsel %vm1646, %v1643, %v1648
    %1650 = vset.pattern.permute.xlu0 3
    %1651 = vperm.xlu0 %1650, %v85
    %v1652 = vpop.permute.xlu0 %1651
    %v1655 = vsel %vm146, %v1644, 0
    %1657 = vmatprep.subr.mxu0 0.0
    %1658 = vmatpush1.msra.mxu0 %v1649
    %1659 = vmatprep.subr.mxu0 0.0
    %1660 = vmatpush1.msra.mxu0 0.0
    %1661 = vmatprep.subr.mxu0 0.0
    %1662 = vmatpush1.msra.mxu0 0.0
    %1663 = vmatprep.subr.mxu0 0.0
    %1664 = vmatpush1.msra.mxu0 0.0
    %1665 = vmatprep.subr.mxu0 0.0
    %1666 = vmatpush1.msra.mxu0 0.0
    %1667 = vmatprep.subr.mxu0 0.0
    %1668 = vmatpush1.msra.mxu0 0.0
    %1669 = vmatprep.subr.mxu0 0.0
    %1670 = vmatpush1.msra.mxu0 0.0
    %1671 = vmatprep.subr.mxu0 0.0
    %1672 = vmatpush1.msra.mxu0 0.0
    %1673 = vmatprep.subr.mxu0 0.0
    %1674 = vmatpush1.msra.mxu0 0.0
    %1675 = vmatprep.subr.mxu0 0.0
    %1676 = vmatpush1.msra.mxu0 0.0
    %1677 = vmatprep.subr.mxu0 0.0
    %1678 = vmatpush1.msra.mxu0 0.0
    %1679 = vmatprep.subr.mxu0 0.0
    %1680 = vmatpush1.msra.mxu0 0.0
    %1681 = vmatprep.subr.mxu0 0.0
    %1682 = vmatpush1.msra.mxu0 0.0
    %1683 = vmatprep.subr.mxu0 0.0
    %1684 = vmatpush1.msra.mxu0 0.0
    %1685 = vmatprep.subr.mxu0 0.0
    %1686 = vmatpush1.msra.mxu0 0.0
    %1687 = vmatprep.subr.mxu0 0.0
    %1688 = vmatpush1.msra.mxu0 0.0
    %1689 = vmatprep.subr.mxu0 0.0
    %1690 = vmatpush1.msra.mxu0 0.0
    %1691 = vmatprep.subr.mxu0 0.0
    %1692 = vmatpush1.msra.mxu0 0.0
    %1693 = vmatprep.subr.mxu0 0.0
    %1694 = vmatpush1.msra.mxu0 0.0
    %1695 = vmatprep.subr.mxu0 0.0
    %1696 = vmatpush1.msra.mxu0 0.0
    %1697 = vmatprep.subr.mxu0 0.0
    %1698 = vmatpush1.msra.mxu0 0.0
    %1699 = vmatprep.subr.mxu0 0.0
    %1700 = vmatpush1.msra.mxu0 0.0
    %1701 = vmatprep.subr.mxu0 0.0
    %1702 = vmatpush1.msra.mxu0 0.0
    %1703 = vmatprep.subr.mxu0 0.0
    %1704 = vmatpush1.msra.mxu0 0.0
    %1705 = vmatprep.subr.mxu0 0.0
    %1706 = vmatpush1.msra.mxu0 0.0
    %1707 = vmatprep.subr.mxu0 0.0
    %1708 = vmatpush1.msra.mxu0 0.0
    %1709 = vmatprep.subr.mxu0 0.0
    %1710 = vmatpush1.msra.mxu0 0.0
    %1711 = vmatprep.subr.mxu0 0.0
    %1712 = vmatpush1.msra.mxu0 0.0
    %1713 = vmatprep.subr.mxu0 0.0
    %1714 = vmatpush1.msra.mxu0 0.0
    %1715 = vmatprep.subr.mxu0 0.0
    %1716 = vmatpush1.msra.mxu0 0.0
    %1717 = vmatprep.subr.mxu0 0.0
    %1718 = vmatpush1.msra.mxu0 0.0
    %1719 = vmatprep.subr.mxu0 0.0
    %1720 = vmatpush1.msra.mxu0 0.0
    %1721 = vmatprep.mubr.f32.mxu0 0.0
    %1722 = vmatmul.mubr.f32.gmra.mrb[0].mxu0 %v1655
    %v1723 = vpop.f32.mrb[0].mxu0
    %v1724 = vadd.f32 %v1652, %v1723
    %v1725 = vpop.f32.mrb[0].mxu0
    %1726 = vdwg.mxu0
    %1727 = vst [vmem:[%s10] sm:$0xff] %v1724
    // Predicated region
    $region46: #{forward.1} parent=1 // pred_check
      _
    $region47: #{forward.1} parent=1 // pred_check_branch
      %1729 = sbr.rel (0) target = $region49
    $region48: #{forward.1} parent=1 // pred_region
      _
    $region49: #{forward.1} parent=1 // pred_fallthru
      _
    // Predicated region
    $region50: #{forward.1} parent=1 // pred_check
      _
    $region51: #{forward.1} parent=1 // pred_check_branch
      %1731 = sbr.rel (0) target = $region53
    $region52: #{forward.1} parent=1 // pred_region
      _
    $region53: #{forward.1} parent=1 // pred_fallthru
      _
    %1732 = vsyncpa [#allocation3], 1

</llo_original>
